<compile_context>
chip_gen: v6e
topology: v6e:2x2x1
jax: 0.10.0
libtpu: 0.0.40
codegen_flags: <defaults>
</compile_context>

<pallas_src>
import numpy as np

import jax
import jax.numpy as jnp
from jax import lax
from jax.experimental import pallas as pl
from jax.experimental.pallas import tpu as pltpu

NEG_SLOPE = 0.2          # LeakyReLU(0.2)
FEATURE_DIMS = 32        # cfg.FUSION_HEAD.FEATURE_DIMS
LSTM_INPUT = 64          # stage4 output channels

CONV1_K = 225
CONV1_STRIDE = 3
CONV1_K_PAD = 232        # next multiple of 8 (pad rows are exact zeros)
POOL1_K = 5
STAGE1_K = 5
POOL2_K = 3
STAGE2_K, STAGE2_D = 3, 2
STAGE3_K, STAGE3_D = 3, 3


def _lrelu(v):
    return jnp.where(v > 0, v, NEG_SLOPE * v)


# ---------------------------------------------------------------------------
# Fused Pallas kernel (whole forward pass, gridless / single invocation)
# ---------------------------------------------------------------------------
def _build_fused_kernel(B, t_p1, t_s1, t_p2, t_s2, t_s3, H):
    T = t_s3                               # LSTM sequence length
    SMW = t_s1 - POOL2_K + 1               # sliding-max width for pool2
    LBW = t_p1 * B                         # lane width after pool1

    def kernel(p_ref, w1_ref, ws1_ref, ws23_ref, w4_ref, selT_ref,
               cmb_ref, b4_ref, wih_ref, whh_ref, bl_ref, out_ref):
        # ---- conv1, ALL batches, one lane-dense MXU matmul ------------------
        # patch columns are ordered (j, tt, b): conv output time = 5*tt + j.
        y1 = _lrelu(jnp.dot(w1_ref[...], p_ref[...],
                            preferred_element_type=jnp.float32)
                    + cmb_ref[0:16, :])                         # (16, 5*t_p1*B)

        # ---- MaxPool1d(5): max over the 5 pre-ordered column groups ---------
        a1 = y1[:, 0:LBW]
        for j in range(1, POOL1_K):
            a1 = jnp.maximum(a1, y1[:, j * LBW:(j + 1) * LBW])  # (16, t_p1*B)

        # ---- stage1: Conv1d(16,32,5) as ONE wide-K matmul -------------------
        # Slices step in whole-time increments (multiples of B): no batch
        # bleeding across the per-batch segments.
        A1 = jnp.concatenate(
            [a1[:, k * B:k * B + t_s1 * B] for k in range(STAGE1_K)],
            axis=0)                                             # (80, t_s1*B)
        s1 = _lrelu(jnp.dot(ws1_ref[...], A1,
                            preferred_element_type=jnp.float32)
                    + cmb_ref[16:48, :])                        # (32, t_s1*B)

        # ---- MaxPool1d(3): sliding max + host-built select (plain NN dot) ---
        sm = jnp.maximum(jnp.maximum(s1[:, 0:SMW * B],
                                     s1[:, B:(SMW + 1) * B]),
                         s1[:, 2 * B:(SMW + 2) * B])            # (32, SMW*B)
        p2 = jnp.dot(sm, selT_ref[...],
                     preferred_element_type=jnp.float32)        # (32, t_p2*B)

        # ---- stage2: Conv1d(32,32,3,dilation=2), one matmul -----------------
        A2 = jnp.concatenate(
            [p2[:, k * STAGE2_D * B:k * STAGE2_D * B + t_s2 * B]
             for k in range(STAGE2_K)], axis=0)                 # (96, t_s2*B)
        s2 = _lrelu(jnp.dot(ws23_ref[0:32, :], A2,
                            preferred_element_type=jnp.float32)
                    + cmb_ref[48:80, :])                        # (32, t_s2*B)

        # ---- stage3: Conv1d(32,32,3,dilation=3), one matmul -----------------
        A3 = jnp.concatenate(
            [s2[:, k * STAGE3_D * B:k * STAGE3_D * B + t_s3 * B]
             for k in range(STAGE3_K)], axis=0)                 # (96, T*B)
        s3 = _lrelu(jnp.dot(ws23_ref[32:64, :], A3,
                            preferred_element_type=jnp.float32)
                    + cmb_ref[80:112, :])                       # (32, T*B)

        # ---- single layout flip at the smallest tensor ----------------------
        s3_rm = jnp.transpose(s3)                               # (T*B, 32) rows = t*B+b

        # ---- stage4: Conv1d(32,64,1) + act ----------------------------------
        e = _lrelu(jnp.dot(s3_rm, w4_ref[...],
                           preferred_element_type=jnp.float32)
                   + b4_ref[...])                               # (T*B, 64)

        # ---- LSTM ------------------------------------------------------------
        # Hoisted, time-major input projection (bias b_ih + b_hh folded in).
        gx = jnp.dot(e, wih_ref[...],
                     preferred_element_type=jnp.float32) + bl_ref[...]  # (T*B, 4H)
        gxs = [gx[t * B:(t + 1) * B, :] for t in range(T)]      # contiguous slices

        whh = whh_ref[...]                                      # (H, 4H)
        h = jnp.zeros((B, H), jnp.float32)
        c = jnp.zeros((B, H), jnp.float32)
        # TODO(synk): keep whh resident in the MXU across steps
        #             (pltpu.matmul_push_rhs / matmul_acc_lhs / matmul_pop).
        for t in range(T):                  # T == 8: fully unrolled, serial
            gates = gxs[t] + jnp.dot(h, whh,
                                     preferred_element_type=jnp.float32)
            i = jax.nn.sigmoid(gates[:, 0 * H:1 * H])           # PyTorch order i,f,g,o
            f = jax.nn.sigmoid(gates[:, 1 * H:2 * H])
            g = jnp.tanh(gates[:, 2 * H:3 * H])
            o = jax.nn.sigmoid(gates[:, 3 * H:4 * H])
            c = f * c + i * g
            h = o * jnp.tanh(c)
        out_ref[...] = h                                        # == r_out[:, -1, :]

    return kernel


# ---------------------------------------------------------------------------
# JAX-side glue (conv1 im2col + pool2 selector) and wrapper
# ---------------------------------------------------------------------------
_VMEM = pl.BlockSpec(memory_space=pltpu.MemorySpace.VMEM)


def _conv1_pool_patches(x, t_p1):
    """im2col for Conv1d(1,16,225,stride=3), columns ordered (j, tt, b).

    Column ((j*t_p1 + tt)*B + b) holds the 225 input taps for conv output time
    5*tt + j of batch b; rows 225..231 are exact zeros (matching the zero
    columns of the padded conv1 weight)."""
    B, _, L = x.shape
    j = jnp.arange(POOL1_K)[:, None]                            # (5, 1)
    tt = jnp.arange(t_p1)[None, :]                              # (1, t_p1)
    starts = CONV1_STRIDE * (POOL1_K * tt + j)                  # (5, t_p1)
    k = jnp.arange(CONV1_K)
    pos = starts[None, :, :] + k[:, None, None]                 # (225, 5, t_p1)
    p = x[:, 0, :][:, pos]                                      # (B, 225, 5, t_p1)
    p = jnp.transpose(p, (1, 2, 3, 0)).reshape(CONV1_K, POOL1_K * t_p1 * B)
    return jnp.pad(p, ((0, CONV1_K_PAD - CONV1_K), (0, 0)))     # (232, 5*t_p1*B)


def _pool2_select(t_s1, t_p2, B):
    """0/1 selector (built at trace time with numpy -> compile-time constant):
    p2[:, tt*B + b] = sliding_max[:, 3*tt*B + b]."""
    SMW = t_s1 - POOL2_K + 1
    sel = np.zeros((SMW * B, t_p2 * B), np.float32)
    for tt in range(t_p2):
        for b in range(B):
            sel[POOL2_K * tt * B + b, tt * B + b] = 1.0
    return jnp.asarray(sel)


def lstm_extractor_forward(x, p):
    """LSTMExtractor.forward (raw_data=True): one fused Pallas kernel."""
    B, _, L = x.shape
    H = p["lstm_whh"].shape[0]
    t_c1 = (L - CONV1_K) // CONV1_STRIDE + 1
    t_p1 = t_c1 // POOL1_K
    t_s1 = t_p1 - (STAGE1_K - 1)
    t_p2 = t_s1 // POOL2_K
    t_s2 = t_p2 - STAGE2_D * (STAGE2_K - 1)
    t_s3 = t_s2 - STAGE3_D * (STAGE3_K - 1)

    patches = _conv1_pool_patches(x, t_p1)      # only JAX-side data prep
    sel_T = _pool2_select(t_s1, t_p2, B)        # compile-time constant

    kernel = _build_fused_kernel(B, t_p1, t_s1, t_p2, t_s2, t_s3, H)
    return pl.pallas_call(
        kernel,
        out_shape=jax.ShapeDtypeStruct((B, H), jnp.float32),
        in_specs=[_VMEM] * 11,
        out_specs=_VMEM,
    )(patches, p["conv1_w"], p["stage1_w"], p["stage23_w"], p["stage4_w"],
      sel_T, p["cm_bias"], p["stage4_b"], p["lstm_wih"], p["lstm_whh"],
      p["lstm_b"])


# ---------------------------------------------------------------------------
# Parameters: PyTorch-layout weights + one-time re-layout into kernel form
# ---------------------------------------------------------------------------
def init_torch_params(key):
    """Deterministic synthetic params in native PyTorch layouts."""
    def uniform(k, shape, fan_in):
        bound = 1.0 / jnp.sqrt(jnp.float32(fan_in))
        return jax.random.uniform(k, shape, jnp.float32, -bound, bound)

    ks = jax.random.split(key, 14)
    H, D = FEATURE_DIMS, LSTM_INPUT
    return {
        "conv1_w": uniform(ks[0], (16, 1, CONV1_K), 1 * CONV1_K),
        "conv1_b": uniform(ks[1], (16,), 1 * CONV1_K),
        "stage1_w": uniform(ks[2], (32, 16, 5), 16 * 5),
        "stage1_b": uniform(ks[3], (32,), 16 * 5),
        "stage2_w": uniform(ks[4], (32, 32, 3), 32 * 3),
        "stage2_b": uniform(ks[5], (32,), 32 * 3),
        "stage3_w": uniform(ks[6], (32, 32, 3), 32 * 3),
        "stage3_b": uniform(ks[7], (32,), 32 * 3),
        "stage4_w": uniform(ks[8], (64, 32, 1), 32 * 1),
        "stage4_b": uniform(ks[9], (64,), 32 * 1),
        "lstm_w_ih": uniform(ks[10], (4 * H, D), H),
        "lstm_w_hh": uniform(ks[11], (4 * H, H), H),
        "lstm_b_ih": uniform(ks[12], (4 * H,), H),
        "lstm_b_hh": uniform(ks[13], (4 * H,), H),
    }


def prepare_params(tp):
    """One-time re-layout of PyTorch-layout weights into kernel-ready form
    (done at load time, never inside the jitted forward)."""
    def taps_lhs(w):    # (Cout, Cin, K) -> (Cout, K*Cin): row r = k*Cin + cin
        return jnp.transpose(w, (0, 2, 1)).reshape(w.shape[0], -1)

    cm_bias = jnp.concatenate(
        [tp["conv1_b"], tp["stage1_b"], tp["stage2_b"], tp["stage3_b"]]
    ).reshape(-1, 1)                                             # (112, 1)

    return {
        "conv1_w": jnp.pad(tp["conv1_w"].reshape(16, CONV1_K),
                           ((0, 0), (0, CONV1_K_PAD - CONV1_K))),   # (16, 232)
        "stage1_w": taps_lhs(tp["stage1_w"]),                        # (32, 80)
        "stage23_w": jnp.concatenate([taps_lhs(tp["stage2_w"]),
                                      taps_lhs(tp["stage3_w"])],
                                     axis=0),                        # (64, 96)
        "stage4_w": jnp.transpose(tp["stage4_w"][:, :, 0]),          # (32, 64)
        "stage4_b": tp["stage4_b"].reshape(1, -1),                   # (1, 64)
        "cm_bias": cm_bias,                                          # (112, 1)
        "lstm_wih": jnp.transpose(tp["lstm_w_ih"]),                  # (64, 4H)
        "lstm_whh": jnp.transpose(tp["lstm_w_hh"]),                  # (H, 4H)
        "lstm_b": (tp["lstm_b_ih"] + tp["lstm_b_hh"]).reshape(1, -1),
    }


# ---------------------------------------------------------------------------
# Pure-XLA reference (mirrors the PyTorch module) for a correctness check
# ---------------------------------------------------------------------------
def _reference_forward(x, tp):
    act = _lrelu

    def conv1d(h, w, b, stride=1, dilation=1):
        out = lax.conv_general_dilated(
            h, w, window_strides=(stride,), padding="VALID",
            rhs_dilation=(dilation,),
            dimension_numbers=("NCH", "OIH", "NCH"),
            precision=lax.Precision.HIGHEST)
        return out + b[None, :, None]

    def maxpool(h, k):
        return lax.reduce_window(h, -jnp.inf, lax.max,
                                 (1, 1, k), (1, 1, k), "VALID")

    h = act(conv1d(x, tp["conv1_w"], tp["conv1_b"], stride=3))
    h = maxpool(h, 5)
    h = act(conv1d(h, tp["stage1_w"], tp["stage1_b"]))
    h = maxpool(h, 3)
    h = act(conv1d(h, tp["stage2_w"], tp["stage2_b"], dilation=2))
    h = act(conv1d(h, tp["stage3_w"], tp["stage3_b"], dilation=3))
    emb = act(conv1d(h, tp["stage4_w"], tp["stage4_b"]))
    emb = jnp.transpose(emb, (0, 2, 1))                   # (B, T, 64)

    H = tp["lstm_w_hh"].shape[1]
    w_ih, w_hh = tp["lstm_w_ih"], tp["lstm_w_hh"]
    bias = tp["lstm_b_ih"] + tp["lstm_b_hh"]
    B = x.shape[0]

    def step(carry, xt):
        hh, cc = carry
        gates = (jnp.dot(xt, w_ih.T, precision=lax.Precision.HIGHEST)
                 + jnp.dot(hh, w_hh.T, precision=lax.Precision.HIGHEST) + bias)
        i, f, g, o = jnp.split(gates, 4, axis=-1)
        i, f, o = jax.nn.sigmoid(i), jax.nn.sigmoid(f), jax.nn.sigmoid(o)
        g = jnp.tanh(g)
        cc = f * cc + i * g
        hh = o * jnp.tanh(cc)
        return (hh, cc), None

    init = (jnp.zeros((B, H), jnp.float32), jnp.zeros((B, H), jnp.float32))
    (h_fin, _), _ = lax.scan(step, init, jnp.swapaxes(emb, 0, 1))
    return h_fin                                          # == r_out[:, -1, :]


if __name__ == "__main__":
    key = jax.random.PRNGKey(0)
    k_x, k_p = jax.random.split(key)

    B, L = 2, 1092   # conv1:290 -> pool1:58 -> s1:54 -> pool2:18 -> s2:14 -> s3:8 -> T=8
    x = jax.random.normal(k_x, (B, 1, L), jnp.float32)
    torch_params = init_torch_params(k_p)
    params = prepare_params(torch_params)

    fwd = jax.jit(lstm_extractor_forward)
    out = jax.block_until_ready(fwd(x, params))

    assert out.shape == (B, FEATURE_DIMS), out.shape
    assert bool(jnp.all(jnp.isfinite(out)))

    ref = jax.jit(_reference_forward)(x, torch_params)
    err = float(jnp.max(jnp.abs(out - ref)))
    assert err < 5e-3, f"mismatch vs XLA reference: {err}"
    print("KERNEL_OK")
</pallas_src>

<mosaic_0001>
module attributes {stable_mosaic.version = 11 : i64} {
  func.func @kernel(%arg0: memref<232x580xf32, #tpu.memory_space<vmem>>, %arg1: memref<16x232xf32, #tpu.memory_space<vmem>>, %arg2: memref<32x80xf32, #tpu.memory_space<vmem>>, %arg3: memref<64x96xf32, #tpu.memory_space<vmem>>, %arg4: memref<32x64xf32, #tpu.memory_space<vmem>>, %arg5: memref<104x36xf32, #tpu.memory_space<vmem>>, %arg6: memref<112x1xf32, #tpu.memory_space<vmem>>, %arg7: memref<1x64xf32, #tpu.memory_space<vmem>>, %arg8: memref<64x128xf32, #tpu.memory_space<vmem>>, %arg9: memref<32x128xf32, #tpu.memory_space<vmem>>, %arg10: memref<1x128xf32, #tpu.memory_space<vmem>>, %arg11: memref<2x32xf32, #tpu.memory_space<vmem>>) attributes {dimension_semantics = [], scalar_prefetch = 0 : i64, scratch_operands = 0 : i64, tpu.core_type = #tpu.core_type<tc>} {
    %c0 = arith.constant 0 : index
    %c0_0 = arith.constant 0 : index
    %0 = vector.load %arg1[%c0, %c0_0] : memref<16x232xf32, #tpu.memory_space<vmem>>, vector<16x232xf32>
    %c0_1 = arith.constant 0 : index
    %c0_2 = arith.constant 0 : index
    %1 = vector.load %arg0[%c0_1, %c0_2] : memref<232x580xf32, #tpu.memory_space<vmem>>, vector<232x580xf32>
    %cst = arith.constant dense<0.000000e+00> : vector<16x580xf32>
    %2 = tpu.matmul %0, %1, %cst {dimension_numbers = #tpu.dot_dimension_numbers<[1], [0], [0], [1], [0, 0, 1, 1], [], []>} : vector<16x232xf32>, vector<232x580xf32>, vector<16x580xf32> -> vector<16x580xf32>
    %c0_3 = arith.constant 0 : index
    %c0_4 = arith.constant 0 : index
    %3 = vector.load %arg6[%c0_3, %c0_4] : memref<112x1xf32, #tpu.memory_space<vmem>>, vector<16x1xf32>
    %4 = vector.broadcast %3 : vector<16x1xf32> to vector<16x580xf32>
    %5 = arith.addf %2, %4 : vector<16x580xf32>
    %cst_5 = arith.constant 0.000000e+00 : f32
    %6 = vector.broadcast %cst_5 : f32 to vector<16x580xf32>
    %7 = arith.cmpf ogt, %5, %6 : vector<16x580xf32>
    %cst_6 = arith.constant 2.000000e-01 : f32
    %8 = vector.broadcast %cst_6 : f32 to vector<16x580xf32>
    %9 = arith.mulf %8, %5 : vector<16x580xf32>
    %10 = arith.select %7, %5, %9 : vector<16x580xi1>, vector<16x580xf32>
    %11 = vector.extract_strided_slice %10 {offsets = [0, 0], sizes = [16, 116], strides = [1, 1]} : vector<16x580xf32> to vector<16x116xf32>
    %12 = vector.extract_strided_slice %10 {offsets = [0, 116], sizes = [16, 116], strides = [1, 1]} : vector<16x580xf32> to vector<16x116xf32>
    %13 = arith.maximumf %11, %12 : vector<16x116xf32>
    %14 = vector.extract_strided_slice %10 {offsets = [0, 232], sizes = [16, 116], strides = [1, 1]} : vector<16x580xf32> to vector<16x116xf32>
    %15 = arith.maximumf %13, %14 : vector<16x116xf32>
    %16 = vector.extract_strided_slice %10 {offsets = [0, 348], sizes = [16, 116], strides = [1, 1]} : vector<16x580xf32> to vector<16x116xf32>
    %17 = arith.maximumf %15, %16 : vector<16x116xf32>
    %18 = vector.extract_strided_slice %10 {offsets = [0, 464], sizes = [16, 116], strides = [1, 1]} : vector<16x580xf32> to vector<16x116xf32>
    %19 = arith.maximumf %17, %18 : vector<16x116xf32>
    %20 = vector.extract_strided_slice %19 {offsets = [0, 0], sizes = [16, 108], strides = [1, 1]} : vector<16x116xf32> to vector<16x108xf32>
    %21 = vector.extract_strided_slice %19 {offsets = [0, 2], sizes = [16, 108], strides = [1, 1]} : vector<16x116xf32> to vector<16x108xf32>
    %22 = vector.extract_strided_slice %19 {offsets = [0, 4], sizes = [16, 108], strides = [1, 1]} : vector<16x116xf32> to vector<16x108xf32>
    %23 = vector.extract_strided_slice %19 {offsets = [0, 6], sizes = [16, 108], strides = [1, 1]} : vector<16x116xf32> to vector<16x108xf32>
    %24 = vector.extract_strided_slice %19 {offsets = [0, 8], sizes = [16, 108], strides = [1, 1]} : vector<16x116xf32> to vector<16x108xf32>
    %25 = tpu.concatenate %20, %21, %22, %23, %24 in 0 : vector<16x108xf32>, vector<16x108xf32>, vector<16x108xf32>, vector<16x108xf32>, vector<16x108xf32> -> vector<80x108xf32>
    %c0_7 = arith.constant 0 : index
    %c0_8 = arith.constant 0 : index
    %26 = vector.load %arg2[%c0_7, %c0_8] : memref<32x80xf32, #tpu.memory_space<vmem>>, vector<32x80xf32>
    %cst_9 = arith.constant dense<0.000000e+00> : vector<32x108xf32>
    %27 = tpu.matmul %26, %25, %cst_9 {dimension_numbers = #tpu.dot_dimension_numbers<[1], [0], [0], [1], [0, 0, 1, 1], [], []>} : vector<32x80xf32>, vector<80x108xf32>, vector<32x108xf32> -> vector<32x108xf32>
    %c16 = arith.constant 16 : index
    %c0_10 = arith.constant 0 : index
    %28 = vector.load %arg6[%c16, %c0_10] : memref<112x1xf32, #tpu.memory_space<vmem>>, vector<32x1xf32>
    %29 = vector.broadcast %28 : vector<32x1xf32> to vector<32x108xf32>
    %30 = arith.addf %27, %29 : vector<32x108xf32>
    %cst_11 = arith.constant 0.000000e+00 : f32
    %31 = vector.broadcast %cst_11 : f32 to vector<32x108xf32>
    %32 = arith.cmpf ogt, %30, %31 : vector<32x108xf32>
    %cst_12 = arith.constant 2.000000e-01 : f32
    %33 = vector.broadcast %cst_12 : f32 to vector<32x108xf32>
    %34 = arith.mulf %33, %30 : vector<32x108xf32>
    %35 = arith.select %32, %30, %34 : vector<32x108xi1>, vector<32x108xf32>
    %36 = vector.extract_strided_slice %35 {offsets = [0, 0], sizes = [32, 104], strides = [1, 1]} : vector<32x108xf32> to vector<32x104xf32>
    %37 = vector.extract_strided_slice %35 {offsets = [0, 2], sizes = [32, 104], strides = [1, 1]} : vector<32x108xf32> to vector<32x104xf32>
    %38 = arith.maximumf %36, %37 : vector<32x104xf32>
    %39 = vector.extract_strided_slice %35 {offsets = [0, 4], sizes = [32, 104], strides = [1, 1]} : vector<32x108xf32> to vector<32x104xf32>
    %40 = arith.maximumf %38, %39 : vector<32x104xf32>
    %c0_13 = arith.constant 0 : index
    %c0_14 = arith.constant 0 : index
    %41 = vector.load %arg5[%c0_13, %c0_14] : memref<104x36xf32, #tpu.memory_space<vmem>>, vector<104x36xf32>
    %cst_15 = arith.constant dense<0.000000e+00> : vector<32x36xf32>
    %42 = tpu.matmul %40, %41, %cst_15 {dimension_numbers = #tpu.dot_dimension_numbers<[1], [0], [0], [1], [0, 0, 1, 1], [], []>} : vector<32x104xf32>, vector<104x36xf32>, vector<32x36xf32> -> vector<32x36xf32>
    %43 = vector.extract_strided_slice %42 {offsets = [0, 0], sizes = [32, 28], strides = [1, 1]} : vector<32x36xf32> to vector<32x28xf32>
    %44 = vector.extract_strided_slice %42 {offsets = [0, 4], sizes = [32, 28], strides = [1, 1]} : vector<32x36xf32> to vector<32x28xf32>
    %45 = vector.extract_strided_slice %42 {offsets = [0, 8], sizes = [32, 28], strides = [1, 1]} : vector<32x36xf32> to vector<32x28xf32>
    %46 = tpu.concatenate %43, %44, %45 in 0 : vector<32x28xf32>, vector<32x28xf32>, vector<32x28xf32> -> vector<96x28xf32>
    %c0_16 = arith.constant 0 : index
    %c0_17 = arith.constant 0 : index
    %47 = vector.load %arg3[%c0_16, %c0_17] : memref<64x96xf32, #tpu.memory_space<vmem>>, vector<32x96xf32>
    %cst_18 = arith.constant dense<0.000000e+00> : vector<32x28xf32>
    %48 = tpu.matmul %47, %46, %cst_18 {dimension_numbers = #tpu.dot_dimension_numbers<[1], [0], [0], [1], [0, 0, 1, 1], [], []>} : vector<32x96xf32>, vector<96x28xf32>, vector<32x28xf32> -> vector<32x28xf32>
    %c48 = arith.constant 48 : index
    %c0_19 = arith.constant 0 : index
    %49 = vector.load %arg6[%c48, %c0_19] : memref<112x1xf32, #tpu.memory_space<vmem>>, vector<32x1xf32>
    %50 = vector.broadcast %49 : vector<32x1xf32> to vector<32x28xf32>
    %51 = arith.addf %48, %50 : vector<32x28xf32>
    %cst_20 = arith.constant 0.000000e+00 : f32
    %52 = vector.broadcast %cst_20 : f32 to vector<32x28xf32>
    %53 = arith.cmpf ogt, %51, %52 : vector<32x28xf32>
    %cst_21 = arith.constant 2.000000e-01 : f32
    %54 = vector.broadcast %cst_21 : f32 to vector<32x28xf32>
    %55 = arith.mulf %54, %51 : vector<32x28xf32>
    %56 = arith.select %53, %51, %55 : vector<32x28xi1>, vector<32x28xf32>
    %57 = vector.extract_strided_slice %56 {offsets = [0, 0], sizes = [32, 16], strides = [1, 1]} : vector<32x28xf32> to vector<32x16xf32>
    %58 = vector.extract_strided_slice %56 {offsets = [0, 6], sizes = [32, 16], strides = [1, 1]} : vector<32x28xf32> to vector<32x16xf32>
    %59 = vector.extract_strided_slice %56 {offsets = [0, 12], sizes = [32, 16], strides = [1, 1]} : vector<32x28xf32> to vector<32x16xf32>
    %60 = tpu.concatenate %57, %58, %59 in 0 : vector<32x16xf32>, vector<32x16xf32>, vector<32x16xf32> -> vector<96x16xf32>
    %c32 = arith.constant 32 : index
    %c0_22 = arith.constant 0 : index
    %61 = vector.load %arg3[%c32, %c0_22] : memref<64x96xf32, #tpu.memory_space<vmem>>, vector<32x96xf32>
    %cst_23 = arith.constant dense<0.000000e+00> : vector<32x16xf32>
    %62 = tpu.matmul %61, %60, %cst_23 {dimension_numbers = #tpu.dot_dimension_numbers<[1], [0], [0], [1], [0, 0, 1, 1], [], []>} : vector<32x96xf32>, vector<96x16xf32>, vector<32x16xf32> -> vector<32x16xf32>
    %c80 = arith.constant 80 : index
    %c0_24 = arith.constant 0 : index
    %63 = vector.load %arg6[%c80, %c0_24] : memref<112x1xf32, #tpu.memory_space<vmem>>, vector<32x1xf32>
    %64 = vector.broadcast %63 : vector<32x1xf32> to vector<32x16xf32>
    %65 = arith.addf %62, %64 : vector<32x16xf32>
    %cst_25 = arith.constant 0.000000e+00 : f32
    %66 = vector.broadcast %cst_25 : f32 to vector<32x16xf32>
    %67 = arith.cmpf ogt, %65, %66 : vector<32x16xf32>
    %cst_26 = arith.constant 2.000000e-01 : f32
    %68 = vector.broadcast %cst_26 : f32 to vector<32x16xf32>
    %69 = arith.mulf %68, %65 : vector<32x16xf32>
    %70 = arith.select %67, %65, %69 : vector<32x16xi1>, vector<32x16xf32>
    %71 = tpu.transpose %70, [1, 0] : vector<32x16xf32> -> vector<16x32xf32>
    %c0_27 = arith.constant 0 : index
    %c0_28 = arith.constant 0 : index
    %72 = vector.load %arg4[%c0_27, %c0_28] : memref<32x64xf32, #tpu.memory_space<vmem>>, vector<32x64xf32>
    %cst_29 = arith.constant dense<0.000000e+00> : vector<16x64xf32>
    %73 = tpu.matmul %71, %72, %cst_29 {dimension_numbers = #tpu.dot_dimension_numbers<[1], [0], [0], [1], [0, 0, 1, 1], [], []>} : vector<16x32xf32>, vector<32x64xf32>, vector<16x64xf32> -> vector<16x64xf32>
    %c0_30 = arith.constant 0 : index
    %c0_31 = arith.constant 0 : index
    %74 = vector.load %arg7[%c0_30, %c0_31] : memref<1x64xf32, #tpu.memory_space<vmem>>, vector<1x64xf32>
    %75 = vector.broadcast %74 : vector<1x64xf32> to vector<16x64xf32>
    %76 = arith.addf %73, %75 : vector<16x64xf32>
    %cst_32 = arith.constant 0.000000e+00 : f32
    %77 = vector.broadcast %cst_32 : f32 to vector<16x64xf32>
    %78 = arith.cmpf ogt, %76, %77 : vector<16x64xf32>
    %cst_33 = arith.constant 2.000000e-01 : f32
    %79 = vector.broadcast %cst_33 : f32 to vector<16x64xf32>
    %80 = arith.mulf %79, %76 : vector<16x64xf32>
    %81 = arith.select %78, %76, %80 : vector<16x64xi1>, vector<16x64xf32>
    %c0_34 = arith.constant 0 : index
    %c0_35 = arith.constant 0 : index
    %82 = vector.load %arg8[%c0_34, %c0_35] : memref<64x128xf32, #tpu.memory_space<vmem>>, vector<64x128xf32>
    %cst_36 = arith.constant dense<0.000000e+00> : vector<16x128xf32>
    %83 = tpu.matmul %81, %82, %cst_36 {dimension_numbers = #tpu.dot_dimension_numbers<[1], [0], [0], [1], [0, 0, 1, 1], [], []>} : vector<16x64xf32>, vector<64x128xf32>, vector<16x128xf32> -> vector<16x128xf32>
    %c0_37 = arith.constant 0 : index
    %c0_38 = arith.constant 0 : index
    %84 = vector.load %arg10[%c0_37, %c0_38] : memref<1x128xf32, #tpu.memory_space<vmem>>, vector<1x128xf32>
    %85 = vector.broadcast %84 : vector<1x128xf32> to vector<16x128xf32>
    %86 = arith.addf %83, %85 : vector<16x128xf32>
    %87 = vector.extract_strided_slice %86 {offsets = [0, 0], sizes = [2, 128], strides = [1, 1]} : vector<16x128xf32> to vector<2x128xf32>
    %88 = vector.extract_strided_slice %86 {offsets = [2, 0], sizes = [2, 128], strides = [1, 1]} : vector<16x128xf32> to vector<2x128xf32>
    %89 = vector.extract_strided_slice %86 {offsets = [4, 0], sizes = [2, 128], strides = [1, 1]} : vector<16x128xf32> to vector<2x128xf32>
    %90 = vector.extract_strided_slice %86 {offsets = [6, 0], sizes = [2, 128], strides = [1, 1]} : vector<16x128xf32> to vector<2x128xf32>
    %91 = vector.extract_strided_slice %86 {offsets = [8, 0], sizes = [2, 128], strides = [1, 1]} : vector<16x128xf32> to vector<2x128xf32>
    %92 = vector.extract_strided_slice %86 {offsets = [10, 0], sizes = [2, 128], strides = [1, 1]} : vector<16x128xf32> to vector<2x128xf32>
    %93 = vector.extract_strided_slice %86 {offsets = [12, 0], sizes = [2, 128], strides = [1, 1]} : vector<16x128xf32> to vector<2x128xf32>
    %94 = vector.extract_strided_slice %86 {offsets = [14, 0], sizes = [2, 128], strides = [1, 1]} : vector<16x128xf32> to vector<2x128xf32>
    %c0_39 = arith.constant 0 : index
    %c0_40 = arith.constant 0 : index
    %95 = vector.load %arg9[%c0_39, %c0_40] : memref<32x128xf32, #tpu.memory_space<vmem>>, vector<32x128xf32>
    %cst_41 = arith.constant 0.000000e+00 : f32
    %96 = vector.broadcast %cst_41 : f32 to vector<2x32xf32>
    %cst_42 = arith.constant 0.000000e+00 : f32
    %97 = vector.broadcast %cst_42 : f32 to vector<2x32xf32>
    %cst_43 = arith.constant dense<0.000000e+00> : vector<2x128xf32>
    %98 = tpu.matmul %96, %95, %cst_43 {dimension_numbers = #tpu.dot_dimension_numbers<[1], [0], [0], [1], [0, 0, 1, 1], [], []>} : vector<2x32xf32>, vector<32x128xf32>, vector<2x128xf32> -> vector<2x128xf32>
    %99 = arith.addf %87, %98 : vector<2x128xf32>
    %100 = vector.extract_strided_slice %99 {offsets = [0, 0], sizes = [2, 32], strides = [1, 1]} : vector<2x128xf32> to vector<2x32xf32>
    %101 = arith.negf %100 : vector<2x32xf32>
    %102 = math.exp %101 : vector<2x32xf32>
    %cst_44 = arith.constant 1.000000e+00 : f32
    %103 = vector.broadcast %cst_44 : f32 to vector<2x32xf32>
    %104 = arith.addf %103, %102 : vector<2x32xf32>
    %105 = arith.divf %103, %104 : vector<2x32xf32>
    %106 = vector.extract_strided_slice %99 {offsets = [0, 32], sizes = [2, 32], strides = [1, 1]} : vector<2x128xf32> to vector<2x32xf32>
    %107 = arith.negf %106 : vector<2x32xf32>
    %108 = math.exp %107 : vector<2x32xf32>
    %cst_45 = arith.constant 1.000000e+00 : f32
    %109 = vector.broadcast %cst_45 : f32 to vector<2x32xf32>
    %110 = arith.addf %109, %108 : vector<2x32xf32>
    %111 = arith.divf %109, %110 : vector<2x32xf32>
    %112 = vector.extract_strided_slice %99 {offsets = [0, 64], sizes = [2, 32], strides = [1, 1]} : vector<2x128xf32> to vector<2x32xf32>
    %113 = math.tanh %112 : vector<2x32xf32>
    %114 = vector.extract_strided_slice %99 {offsets = [0, 96], sizes = [2, 32], strides = [1, 1]} : vector<2x128xf32> to vector<2x32xf32>
    %115 = arith.negf %114 : vector<2x32xf32>
    %116 = math.exp %115 : vector<2x32xf32>
    %cst_46 = arith.constant 1.000000e+00 : f32
    %117 = vector.broadcast %cst_46 : f32 to vector<2x32xf32>
    %118 = arith.addf %117, %116 : vector<2x32xf32>
    %119 = arith.divf %117, %118 : vector<2x32xf32>
    %120 = arith.mulf %111, %97 : vector<2x32xf32>
    %121 = arith.mulf %105, %113 : vector<2x32xf32>
    %122 = arith.addf %120, %121 : vector<2x32xf32>
    %123 = math.tanh %122 : vector<2x32xf32>
    %124 = arith.mulf %119, %123 : vector<2x32xf32>
    %cst_47 = arith.constant dense<0.000000e+00> : vector<2x128xf32>
    %125 = tpu.matmul %124, %95, %cst_47 {dimension_numbers = #tpu.dot_dimension_numbers<[1], [0], [0], [1], [0, 0, 1, 1], [], []>} : vector<2x32xf32>, vector<32x128xf32>, vector<2x128xf32> -> vector<2x128xf32>
    %126 = arith.addf %88, %125 : vector<2x128xf32>
    %127 = vector.extract_strided_slice %126 {offsets = [0, 0], sizes = [2, 32], strides = [1, 1]} : vector<2x128xf32> to vector<2x32xf32>
    %128 = arith.negf %127 : vector<2x32xf32>
    %129 = math.exp %128 : vector<2x32xf32>
    %cst_48 = arith.constant 1.000000e+00 : f32
    %130 = vector.broadcast %cst_48 : f32 to vector<2x32xf32>
    %131 = arith.addf %130, %129 : vector<2x32xf32>
    %132 = arith.divf %130, %131 : vector<2x32xf32>
    %133 = vector.extract_strided_slice %126 {offsets = [0, 32], sizes = [2, 32], strides = [1, 1]} : vector<2x128xf32> to vector<2x32xf32>
    %134 = arith.negf %133 : vector<2x32xf32>
    %135 = math.exp %134 : vector<2x32xf32>
    %cst_49 = arith.constant 1.000000e+00 : f32
    %136 = vector.broadcast %cst_49 : f32 to vector<2x32xf32>
    %137 = arith.addf %136, %135 : vector<2x32xf32>
    %138 = arith.divf %136, %137 : vector<2x32xf32>
    %139 = vector.extract_strided_slice %126 {offsets = [0, 64], sizes = [2, 32], strides = [1, 1]} : vector<2x128xf32> to vector<2x32xf32>
    %140 = math.tanh %139 : vector<2x32xf32>
    %141 = vector.extract_strided_slice %126 {offsets = [0, 96], sizes = [2, 32], strides = [1, 1]} : vector<2x128xf32> to vector<2x32xf32>
    %142 = arith.negf %141 : vector<2x32xf32>
    %143 = math.exp %142 : vector<2x32xf32>
    %cst_50 = arith.constant 1.000000e+00 : f32
    %144 = vector.broadcast %cst_50 : f32 to vector<2x32xf32>
    %145 = arith.addf %144, %143 : vector<2x32xf32>
    %146 = arith.divf %144, %145 : vector<2x32xf32>
    %147 = arith.mulf %138, %122 : vector<2x32xf32>
    %148 = arith.mulf %132, %140 : vector<2x32xf32>
    %149 = arith.addf %147, %148 : vector<2x32xf32>
    %150 = math.tanh %149 : vector<2x32xf32>
    %151 = arith.mulf %146, %150 : vector<2x32xf32>
    %cst_51 = arith.constant dense<0.000000e+00> : vector<2x128xf32>
    %152 = tpu.matmul %151, %95, %cst_51 {dimension_numbers = #tpu.dot_dimension_numbers<[1], [0], [0], [1], [0, 0, 1, 1], [], []>} : vector<2x32xf32>, vector<32x128xf32>, vector<2x128xf32> -> vector<2x128xf32>
    %153 = arith.addf %89, %152 : vector<2x128xf32>
    %154 = vector.extract_strided_slice %153 {offsets = [0, 0], sizes = [2, 32], strides = [1, 1]} : vector<2x128xf32> to vector<2x32xf32>
    %155 = arith.negf %154 : vector<2x32xf32>
    %156 = math.exp %155 : vector<2x32xf32>
    %cst_52 = arith.constant 1.000000e+00 : f32
    %157 = vector.broadcast %cst_52 : f32 to vector<2x32xf32>
    %158 = arith.addf %157, %156 : vector<2x32xf32>
    %159 = arith.divf %157, %158 : vector<2x32xf32>
    %160 = vector.extract_strided_slice %153 {offsets = [0, 32], sizes = [2, 32], strides = [1, 1]} : vector<2x128xf32> to vector<2x32xf32>
    %161 = arith.negf %160 : vector<2x32xf32>
    %162 = math.exp %161 : vector<2x32xf32>
    %cst_53 = arith.constant 1.000000e+00 : f32
    %163 = vector.broadcast %cst_53 : f32 to vector<2x32xf32>
    %164 = arith.addf %163, %162 : vector<2x32xf32>
    %165 = arith.divf %163, %164 : vector<2x32xf32>
    %166 = vector.extract_strided_slice %153 {offsets = [0, 64], sizes = [2, 32], strides = [1, 1]} : vector<2x128xf32> to vector<2x32xf32>
    %167 = math.tanh %166 : vector<2x32xf32>
    %168 = vector.extract_strided_slice %153 {offsets = [0, 96], sizes = [2, 32], strides = [1, 1]} : vector<2x128xf32> to vector<2x32xf32>
    %169 = arith.negf %168 : vector<2x32xf32>
    %170 = math.exp %169 : vector<2x32xf32>
    %cst_54 = arith.constant 1.000000e+00 : f32
    %171 = vector.broadcast %cst_54 : f32 to vector<2x32xf32>
    %172 = arith.addf %171, %170 : vector<2x32xf32>
    %173 = arith.divf %171, %172 : vector<2x32xf32>
    %174 = arith.mulf %165, %149 : vector<2x32xf32>
    %175 = arith.mulf %159, %167 : vector<2x32xf32>
    %176 = arith.addf %174, %175 : vector<2x32xf32>
    %177 = math.tanh %176 : vector<2x32xf32>
    %178 = arith.mulf %173, %177 : vector<2x32xf32>
    %cst_55 = arith.constant dense<0.000000e+00> : vector<2x128xf32>
    %179 = tpu.matmul %178, %95, %cst_55 {dimension_numbers = #tpu.dot_dimension_numbers<[1], [0], [0], [1], [0, 0, 1, 1], [], []>} : vector<2x32xf32>, vector<32x128xf32>, vector<2x128xf32> -> vector<2x128xf32>
    %180 = arith.addf %90, %179 : vector<2x128xf32>
    %181 = vector.extract_strided_slice %180 {offsets = [0, 0], sizes = [2, 32], strides = [1, 1]} : vector<2x128xf32> to vector<2x32xf32>
    %182 = arith.negf %181 : vector<2x32xf32>
    %183 = math.exp %182 : vector<2x32xf32>
    %cst_56 = arith.constant 1.000000e+00 : f32
    %184 = vector.broadcast %cst_56 : f32 to vector<2x32xf32>
    %185 = arith.addf %184, %183 : vector<2x32xf32>
    %186 = arith.divf %184, %185 : vector<2x32xf32>
    %187 = vector.extract_strided_slice %180 {offsets = [0, 32], sizes = [2, 32], strides = [1, 1]} : vector<2x128xf32> to vector<2x32xf32>
    %188 = arith.negf %187 : vector<2x32xf32>
    %189 = math.exp %188 : vector<2x32xf32>
    %cst_57 = arith.constant 1.000000e+00 : f32
    %190 = vector.broadcast %cst_57 : f32 to vector<2x32xf32>
    %191 = arith.addf %190, %189 : vector<2x32xf32>
    %192 = arith.divf %190, %191 : vector<2x32xf32>
    %193 = vector.extract_strided_slice %180 {offsets = [0, 64], sizes = [2, 32], strides = [1, 1]} : vector<2x128xf32> to vector<2x32xf32>
    %194 = math.tanh %193 : vector<2x32xf32>
    %195 = vector.extract_strided_slice %180 {offsets = [0, 96], sizes = [2, 32], strides = [1, 1]} : vector<2x128xf32> to vector<2x32xf32>
    %196 = arith.negf %195 : vector<2x32xf32>
    %197 = math.exp %196 : vector<2x32xf32>
    %cst_58 = arith.constant 1.000000e+00 : f32
    %198 = vector.broadcast %cst_58 : f32 to vector<2x32xf32>
    %199 = arith.addf %198, %197 : vector<2x32xf32>
    %200 = arith.divf %198, %199 : vector<2x32xf32>
    %201 = arith.mulf %192, %176 : vector<2x32xf32>
    %202 = arith.mulf %186, %194 : vector<2x32xf32>
    %203 = arith.addf %201, %202 : vector<2x32xf32>
    %204 = math.tanh %203 : vector<2x32xf32>
    %205 = arith.mulf %200, %204 : vector<2x32xf32>
    %cst_59 = arith.constant dense<0.000000e+00> : vector<2x128xf32>
    %206 = tpu.matmul %205, %95, %cst_59 {dimension_numbers = #tpu.dot_dimension_numbers<[1], [0], [0], [1], [0, 0, 1, 1], [], []>} : vector<2x32xf32>, vector<32x128xf32>, vector<2x128xf32> -> vector<2x128xf32>
    %207 = arith.addf %91, %206 : vector<2x128xf32>
    %208 = vector.extract_strided_slice %207 {offsets = [0, 0], sizes = [2, 32], strides = [1, 1]} : vector<2x128xf32> to vector<2x32xf32>
    %209 = arith.negf %208 : vector<2x32xf32>
    %210 = math.exp %209 : vector<2x32xf32>
    %cst_60 = arith.constant 1.000000e+00 : f32
    %211 = vector.broadcast %cst_60 : f32 to vector<2x32xf32>
    %212 = arith.addf %211, %210 : vector<2x32xf32>
    %213 = arith.divf %211, %212 : vector<2x32xf32>
    %214 = vector.extract_strided_slice %207 {offsets = [0, 32], sizes = [2, 32], strides = [1, 1]} : vector<2x128xf32> to vector<2x32xf32>
    %215 = arith.negf %214 : vector<2x32xf32>
    %216 = math.exp %215 : vector<2x32xf32>
    %cst_61 = arith.constant 1.000000e+00 : f32
    %217 = vector.broadcast %cst_61 : f32 to vector<2x32xf32>
    %218 = arith.addf %217, %216 : vector<2x32xf32>
    %219 = arith.divf %217, %218 : vector<2x32xf32>
    %220 = vector.extract_strided_slice %207 {offsets = [0, 64], sizes = [2, 32], strides = [1, 1]} : vector<2x128xf32> to vector<2x32xf32>
    %221 = math.tanh %220 : vector<2x32xf32>
    %222 = vector.extract_strided_slice %207 {offsets = [0, 96], sizes = [2, 32], strides = [1, 1]} : vector<2x128xf32> to vector<2x32xf32>
    %223 = arith.negf %222 : vector<2x32xf32>
    %224 = math.exp %223 : vector<2x32xf32>
    %cst_62 = arith.constant 1.000000e+00 : f32
    %225 = vector.broadcast %cst_62 : f32 to vector<2x32xf32>
    %226 = arith.addf %225, %224 : vector<2x32xf32>
    %227 = arith.divf %225, %226 : vector<2x32xf32>
    %228 = arith.mulf %219, %203 : vector<2x32xf32>
    %229 = arith.mulf %213, %221 : vector<2x32xf32>
    %230 = arith.addf %228, %229 : vector<2x32xf32>
    %231 = math.tanh %230 : vector<2x32xf32>
    %232 = arith.mulf %227, %231 : vector<2x32xf32>
    %cst_63 = arith.constant dense<0.000000e+00> : vector<2x128xf32>
    %233 = tpu.matmul %232, %95, %cst_63 {dimension_numbers = #tpu.dot_dimension_numbers<[1], [0], [0], [1], [0, 0, 1, 1], [], []>} : vector<2x32xf32>, vector<32x128xf32>, vector<2x128xf32> -> vector<2x128xf32>
    %234 = arith.addf %92, %233 : vector<2x128xf32>
    %235 = vector.extract_strided_slice %234 {offsets = [0, 0], sizes = [2, 32], strides = [1, 1]} : vector<2x128xf32> to vector<2x32xf32>
    %236 = arith.negf %235 : vector<2x32xf32>
    %237 = math.exp %236 : vector<2x32xf32>
    %cst_64 = arith.constant 1.000000e+00 : f32
    %238 = vector.broadcast %cst_64 : f32 to vector<2x32xf32>
    %239 = arith.addf %238, %237 : vector<2x32xf32>
    %240 = arith.divf %238, %239 : vector<2x32xf32>
    %241 = vector.extract_strided_slice %234 {offsets = [0, 32], sizes = [2, 32], strides = [1, 1]} : vector<2x128xf32> to vector<2x32xf32>
    %242 = arith.negf %241 : vector<2x32xf32>
    %243 = math.exp %242 : vector<2x32xf32>
    %cst_65 = arith.constant 1.000000e+00 : f32
    %244 = vector.broadcast %cst_65 : f32 to vector<2x32xf32>
    %245 = arith.addf %244, %243 : vector<2x32xf32>
    %246 = arith.divf %244, %245 : vector<2x32xf32>
    %247 = vector.extract_strided_slice %234 {offsets = [0, 64], sizes = [2, 32], strides = [1, 1]} : vector<2x128xf32> to vector<2x32xf32>
    %248 = math.tanh %247 : vector<2x32xf32>
    %249 = vector.extract_strided_slice %234 {offsets = [0, 96], sizes = [2, 32], strides = [1, 1]} : vector<2x128xf32> to vector<2x32xf32>
    %250 = arith.negf %249 : vector<2x32xf32>
    %251 = math.exp %250 : vector<2x32xf32>
    %cst_66 = arith.constant 1.000000e+00 : f32
    %252 = vector.broadcast %cst_66 : f32 to vector<2x32xf32>
    %253 = arith.addf %252, %251 : vector<2x32xf32>
    %254 = arith.divf %252, %253 : vector<2x32xf32>
    %255 = arith.mulf %246, %230 : vector<2x32xf32>
    %256 = arith.mulf %240, %248 : vector<2x32xf32>
    %257 = arith.addf %255, %256 : vector<2x32xf32>
    %258 = math.tanh %257 : vector<2x32xf32>
    %259 = arith.mulf %254, %258 : vector<2x32xf32>
    %cst_67 = arith.constant dense<0.000000e+00> : vector<2x128xf32>
    %260 = tpu.matmul %259, %95, %cst_67 {dimension_numbers = #tpu.dot_dimension_numbers<[1], [0], [0], [1], [0, 0, 1, 1], [], []>} : vector<2x32xf32>, vector<32x128xf32>, vector<2x128xf32> -> vector<2x128xf32>
    %261 = arith.addf %93, %260 : vector<2x128xf32>
    %262 = vector.extract_strided_slice %261 {offsets = [0, 0], sizes = [2, 32], strides = [1, 1]} : vector<2x128xf32> to vector<2x32xf32>
    %263 = arith.negf %262 : vector<2x32xf32>
    %264 = math.exp %263 : vector<2x32xf32>
    %cst_68 = arith.constant 1.000000e+00 : f32
    %265 = vector.broadcast %cst_68 : f32 to vector<2x32xf32>
    %266 = arith.addf %265, %264 : vector<2x32xf32>
    %267 = arith.divf %265, %266 : vector<2x32xf32>
    %268 = vector.extract_strided_slice %261 {offsets = [0, 32], sizes = [2, 32], strides = [1, 1]} : vector<2x128xf32> to vector<2x32xf32>
    %269 = arith.negf %268 : vector<2x32xf32>
    %270 = math.exp %269 : vector<2x32xf32>
    %cst_69 = arith.constant 1.000000e+00 : f32
    %271 = vector.broadcast %cst_69 : f32 to vector<2x32xf32>
    %272 = arith.addf %271, %270 : vector<2x32xf32>
    %273 = arith.divf %271, %272 : vector<2x32xf32>
    %274 = vector.extract_strided_slice %261 {offsets = [0, 64], sizes = [2, 32], strides = [1, 1]} : vector<2x128xf32> to vector<2x32xf32>
    %275 = math.tanh %274 : vector<2x32xf32>
    %276 = vector.extract_strided_slice %261 {offsets = [0, 96], sizes = [2, 32], strides = [1, 1]} : vector<2x128xf32> to vector<2x32xf32>
    %277 = arith.negf %276 : vector<2x32xf32>
    %278 = math.exp %277 : vector<2x32xf32>
    %cst_70 = arith.constant 1.000000e+00 : f32
    %279 = vector.broadcast %cst_70 : f32 to vector<2x32xf32>
    %280 = arith.addf %279, %278 : vector<2x32xf32>
    %281 = arith.divf %279, %280 : vector<2x32xf32>
    %282 = arith.mulf %273, %257 : vector<2x32xf32>
    %283 = arith.mulf %267, %275 : vector<2x32xf32>
    %284 = arith.addf %282, %283 : vector<2x32xf32>
    %285 = math.tanh %284 : vector<2x32xf32>
    %286 = arith.mulf %281, %285 : vector<2x32xf32>
    %cst_71 = arith.constant dense<0.000000e+00> : vector<2x128xf32>
    %287 = tpu.matmul %286, %95, %cst_71 {dimension_numbers = #tpu.dot_dimension_numbers<[1], [0], [0], [1], [0, 0, 1, 1], [], []>} : vector<2x32xf32>, vector<32x128xf32>, vector<2x128xf32> -> vector<2x128xf32>
    %288 = arith.addf %94, %287 : vector<2x128xf32>
    %289 = vector.extract_strided_slice %288 {offsets = [0, 0], sizes = [2, 32], strides = [1, 1]} : vector<2x128xf32> to vector<2x32xf32>
    %290 = arith.negf %289 : vector<2x32xf32>
    %291 = math.exp %290 : vector<2x32xf32>
    %cst_72 = arith.constant 1.000000e+00 : f32
    %292 = vector.broadcast %cst_72 : f32 to vector<2x32xf32>
    %293 = arith.addf %292, %291 : vector<2x32xf32>
    %294 = arith.divf %292, %293 : vector<2x32xf32>
    %295 = vector.extract_strided_slice %288 {offsets = [0, 32], sizes = [2, 32], strides = [1, 1]} : vector<2x128xf32> to vector<2x32xf32>
    %296 = arith.negf %295 : vector<2x32xf32>
    %297 = math.exp %296 : vector<2x32xf32>
    %cst_73 = arith.constant 1.000000e+00 : f32
    %298 = vector.broadcast %cst_73 : f32 to vector<2x32xf32>
    %299 = arith.addf %298, %297 : vector<2x32xf32>
    %300 = arith.divf %298, %299 : vector<2x32xf32>
    %301 = vector.extract_strided_slice %288 {offsets = [0, 64], sizes = [2, 32], strides = [1, 1]} : vector<2x128xf32> to vector<2x32xf32>
    %302 = math.tanh %301 : vector<2x32xf32>
    %303 = vector.extract_strided_slice %288 {offsets = [0, 96], sizes = [2, 32], strides = [1, 1]} : vector<2x128xf32> to vector<2x32xf32>
    %304 = arith.negf %303 : vector<2x32xf32>
    %305 = math.exp %304 : vector<2x32xf32>
    %cst_74 = arith.constant 1.000000e+00 : f32
    %306 = vector.broadcast %cst_74 : f32 to vector<2x32xf32>
    %307 = arith.addf %306, %305 : vector<2x32xf32>
    %308 = arith.divf %306, %307 : vector<2x32xf32>
    %309 = arith.mulf %300, %284 : vector<2x32xf32>
    %310 = arith.mulf %294, %302 : vector<2x32xf32>
    %311 = arith.addf %309, %310 : vector<2x32xf32>
    %312 = math.tanh %311 : vector<2x32xf32>
    %313 = arith.mulf %308, %312 : vector<2x32xf32>
    %c0_75 = arith.constant 0 : index
    %c0_76 = arith.constant 0 : index
    %314 = vector.load %arg11[%c0_75, %c0_76] : memref<2x32xf32, #tpu.memory_space<vmem>>, vector<2x32xf32>
    tpu.vector_store %arg11[%c0_75, %c0_76], %313 {strides = array<i32>} : memref<2x32xf32, #tpu.memory_space<vmem>>, vector<2x32xf32>,
    return
  }
}

</mosaic_0001>

<llo_original>
// kernel: lstm_extractor_forward.1
$region0: #{lstm_extractor_forward.1}
  #allocation0 [shape = 'u32[]', space=smem, size = 0x4, offset = 0x4, fixed_abs, tag = 'smem constant byte address 0x4 - core index']
  #allocation1 [shape = 'u32[144,128]{1,0:T(1,128)}', space=vmem, size = 0x12000, scoped, tag = 'internal scratch']
  %s0 = inlined_call_operand.vmem [shape: f32[232,580], index: 0, kind: input, shape index: {}]
  %s1 = inlined_call_operand.vmem [shape: f32[16,232], index: 1, kind: input, shape index: {}]
  %s2 = inlined_call_operand.vmem [shape: f32[32,80], index: 2, kind: input, shape index: {}]
  %s3 = inlined_call_operand.vmem [shape: f32[64,96], index: 3, kind: input, shape index: {}]
  %s4 = inlined_call_operand.vmem [shape: f32[32,64], index: 4, kind: input, shape index: {}]
  %s5 = inlined_call_operand.vmem [shape: f32[104,36], index: 5, kind: input, shape index: {}]
  %s6 = inlined_call_operand.vmem [shape: f32[112,1], index: 6, kind: input, shape index: {}]
  %s7 = inlined_call_operand.vmem [shape: f32[1,64], index: 7, kind: input, shape index: {}]
  %s8 = inlined_call_operand.vmem [shape: f32[64,128], index: 8, kind: input, shape index: {}]
  %s9 = inlined_call_operand.vmem [shape: f32[32,128], index: 9, kind: input, shape index: {}]
  %s10 = inlined_call_operand.vmem [shape: f32[1,128], index: 10, kind: input, shape index: {}]
  %s11 = inlined_call_operand.hbm [shape: f32[2,32], index: 11, kind: output, shape index: {}]
  %s12 = sld [smem:[#allocation0]]
  $region54: #{lstm_extractor_forward.1} parent=0
    _
  %s14 = ssub.s32 1, %s12
  %s15 = scalar_select 0, %s14, %s12
  $region1: #{lstm_extractor_forward.1} parent=0
    #allocation2 [shape = 'u8[1024]{0}', space=vmem, size = 0x400, scoped, tag = 'output window, operand 0, single buffered']
    #allocation3 [shape = 's32[1]{0}', space=sflag, size = 0x4, scoped, tag = 'scoped memory for lstm_extractor_forward.1']
    %16 = vsyncpa [#allocation3], 0
    // Predicated region
    $region2: #{lstm_extractor_forward.1} parent=1 // pred_check
      _
    $region3: #{lstm_extractor_forward.1} parent=1 // pred_check_branch
      %18 = sbr.rel (0) target = $region5
    $region4: #{lstm_extractor_forward.1} parent=1 // pred_region
      _
    $region5: #{lstm_extractor_forward.1} parent=1 // pred_fallthru
      _
    // Predicated region
    $region6: #{lstm_extractor_forward.1} parent=1 // pred_check
      _
    $region7: #{lstm_extractor_forward.1} parent=1 // pred_check_branch
      %20 = sbr.rel (0) target = $region9
    $region8: #{lstm_extractor_forward.1} parent=1 // pred_region
      _
    $region9: #{lstm_extractor_forward.1} parent=1 // pred_fallthru
      _
    // Predicated region
    $region10: #{lstm_extractor_forward.1} parent=1 // pred_check
      _
    $region11: #{lstm_extractor_forward.1} parent=1 // pred_check_branch
      %22 = sbr.rel (0) target = $region13
    $region12: #{lstm_extractor_forward.1} parent=1 // pred_region
      _
    $region13: #{lstm_extractor_forward.1} parent=1 // pred_fallthru
      _
    // Predicated region
    $region14: #{lstm_extractor_forward.1} parent=1 // pred_check
      _
    $region15: #{lstm_extractor_forward.1} parent=1 // pred_check_branch
      %24 = sbr.rel (0) target = $region17
    $region16: #{lstm_extractor_forward.1} parent=1 // pred_region
      _
    $region17: #{lstm_extractor_forward.1} parent=1 // pred_fallthru
      _
    // Predicated region
    $region18: #{lstm_extractor_forward.1} parent=1 // pred_check
      _
    $region19: #{lstm_extractor_forward.1} parent=1 // pred_check_branch
      %26 = sbr.rel (0) target = $region21
    $region20: #{lstm_extractor_forward.1} parent=1 // pred_region
      _
    $region21: #{lstm_extractor_forward.1} parent=1 // pred_fallthru
      _
    // Predicated region
    $region22: #{lstm_extractor_forward.1} parent=1 // pred_check
      _
    $region23: #{lstm_extractor_forward.1} parent=1 // pred_check_branch
      %28 = sbr.rel (0) target = $region25
    $region24: #{lstm_extractor_forward.1} parent=1 // pred_region
      _
    $region25: #{lstm_extractor_forward.1} parent=1 // pred_fallthru
      _
    // Predicated region
    $region26: #{lstm_extractor_forward.1} parent=1 // pred_check
      _
    $region27: #{lstm_extractor_forward.1} parent=1 // pred_check_branch
      %30 = sbr.rel (0) target = $region29
    $region28: #{lstm_extractor_forward.1} parent=1 // pred_region
      _
    $region29: #{lstm_extractor_forward.1} parent=1 // pred_fallthru
      _
    // Predicated region
    $region30: #{lstm_extractor_forward.1} parent=1 // pred_check
      _
    $region31: #{lstm_extractor_forward.1} parent=1 // pred_check_branch
      %32 = sbr.rel (0) target = $region33
    $region32: #{lstm_extractor_forward.1} parent=1 // pred_region
      _
    $region33: #{lstm_extractor_forward.1} parent=1 // pred_fallthru
      _
    // Predicated region
    $region34: #{lstm_extractor_forward.1} parent=1 // pred_check
      _
    $region35: #{lstm_extractor_forward.1} parent=1 // pred_check_branch
      %34 = sbr.rel (0) target = $region37
    $region36: #{lstm_extractor_forward.1} parent=1 // pred_region
      _
    $region37: #{lstm_extractor_forward.1} parent=1 // pred_fallthru
      _
    // Predicated region
    $region38: #{lstm_extractor_forward.1} parent=1 // pred_check
      _
    $region39: #{lstm_extractor_forward.1} parent=1 // pred_check_branch
      %36 = sbr.rel (0) target = $region41
    $region40: #{lstm_extractor_forward.1} parent=1 // pred_region
      _
    $region41: #{lstm_extractor_forward.1} parent=1 // pred_fallthru
      _
    // Predicated region
    $region42: #{lstm_extractor_forward.1} parent=1 // pred_check
      _
    $region43: #{lstm_extractor_forward.1} parent=1 // pred_check_branch
      %38 = sbr.rel (0) target = $region45
    $region44: #{lstm_extractor_forward.1} parent=1 // pred_region
      _
    $region45: #{lstm_extractor_forward.1} parent=1 // pred_fallthru
      _
    %v39 = vld [vmem:[%s1] sm:$0xff]
    %v40 = vld [vmem:[%s1 + $0x8] sm:$0xff]
    %v41 = vld [vmem:[%s1 + $0x10] sm:$0xff]
    %v42 = vld [vmem:[%s1 + $0x18] sm:$0xff]
    %v43 = vld [vmem:[%s0] sm:$0xff]
    %v44 = vld [vmem:[%s0 + $0x8] sm:$0xff]
    %v45 = vld [vmem:[%s0 + $0x10] sm:$0xff]
    %v46 = vld [vmem:[%s0 + $0x18] sm:$0xff]
    %v47 = vld [vmem:[%s0 + $0x20] sm:$0xff]
    %v48 = vld [vmem:[%s0 + $0x28] sm:$0xff]
    %v49 = vld [vmem:[%s0 + $0x30] sm:$0xff]
    %v50 = vld [vmem:[%s0 + $0x38] sm:$0xff]
    %v51 = vld [vmem:[%s0 + $0x40] sm:$0xff]
    %v52 = vld [vmem:[%s0 + $0x48] sm:$0xff]
    %v53 = vld [vmem:[%s0 + $0x50] sm:$0xff]
    %v54 = vld [vmem:[%s0 + $0x58] sm:$0xff]
    %v55 = vld [vmem:[%s0 + $0x60] sm:$0xff]
    %v56 = vld [vmem:[%s0 + $0x68] sm:$0xff]
    %v57 = vld [vmem:[%s0 + $0x70] sm:$0xff]
    %v58 = vld [vmem:[%s0 + $0x78] sm:$0xff]
    %v59 = vld [vmem:[%s0 + $0x80] sm:$0xff]
    %v60 = vld [vmem:[%s0 + $0x88] sm:$0xff]
    %v61 = vld [vmem:[%s0 + $0x90] sm:$0xff]
    %v62 = vld [vmem:[%s0 + $0x98] sm:$0xff]
    %v63 = vld [vmem:[%s0 + $0xa0] sm:$0xff]
    %v64 = vld [vmem:[%s0 + $0xa8] sm:$0xff]
    %v65 = vld [vmem:[%s0 + $0xb0] sm:$0xff]
    %v66 = vld [vmem:[%s0 + $0xb8] sm:$0xff]
    %v67 = vld [vmem:[%s0 + $0xc0] sm:$0xff]
    %v68 = vld [vmem:[%s0 + $0xc8] sm:$0xff]
    %v69 = vld [vmem:[%s0 + $0xd0] sm:$0xff]
    %v70 = vld [vmem:[%s0 + $0xd8] sm:$0xff]
    %v71 = vld [vmem:[%s0 + $0xe0] sm:$0xff]
    %v72 = vld [vmem:[%s0 + $0xe8] sm:$0xff]
    %v73 = vld [vmem:[%s0 + $0xf0] sm:$0xff]
    %v74 = vld [vmem:[%s0 + $0xf8] sm:$0xff]
    %v75 = vld [vmem:[%s0 + $0x100] sm:$0xff]
    %v76 = vld [vmem:[%s0 + $0x108] sm:$0xff]
    %v77 = vld [vmem:[%s0 + $0x110] sm:$0xff]
    %v78 = vld [vmem:[%s0 + $0x118] sm:$0xff]
    %v79 = vld [vmem:[%s0 + $0x120] sm:$0xff]
    %v80 = vld [vmem:[%s0 + $0x128] sm:$0xff]
    %v81 = vld [vmem:[%s0 + $0x130] sm:$0xff]
    %v82 = vld [vmem:[%s0 + $0x138] sm:$0xff]
    %v83 = vld [vmem:[%s0 + $0x140] sm:$0xff]
    %v84 = vld [vmem:[%s0 + $0x148] sm:$0xff]
    %v85 = vld [vmem:[%s0 + $0x150] sm:$0xff]
    %v86 = vld [vmem:[%s0 + $0x158] sm:$0xff]
    %v87 = vld [vmem:[%s0 + $0x160] sm:$0xff]
    %v88 = vld [vmem:[%s0 + $0x168] sm:$0xff]
    %v89 = vld [vmem:[%s0 + $0x170] sm:$0xff]
    %v90 = vld [vmem:[%s0 + $0x178] sm:$0xff]
    %v91 = vld [vmem:[%s0 + $0x180] sm:$0xff]
    %v92 = vld [vmem:[%s0 + $0x188] sm:$0xff]
    %v93 = vld [vmem:[%s0 + $0x190] sm:$0xff]
    %v94 = vld [vmem:[%s0 + $0x198] sm:$0xff]
    %v95 = vld [vmem:[%s0 + $0x1a0] sm:$0xff]
    %v96 = vld [vmem:[%s0 + $0x1a8] sm:$0xff]
    %v97 = vld [vmem:[%s0 + $0x1b0] sm:$0xff]
    %v98 = vld [vmem:[%s0 + $0x1b8] sm:$0xff]
    %v99 = vld [vmem:[%s0 + $0x1c0] sm:$0xff]
    %v100 = vld [vmem:[%s0 + $0x1c8] sm:$0xff]
    %v101 = vld [vmem:[%s0 + $0x1d0] sm:$0xff]
    %v102 = vld [vmem:[%s0 + $0x1d8] sm:$0xff]
    %v103 = vld [vmem:[%s0 + $0x1e0] sm:$0xff]
    %v104 = vld [vmem:[%s0 + $0x1e8] sm:$0xff]
    %v105 = vld [vmem:[%s0 + $0x1f0] sm:$0xff]
    %v106 = vld [vmem:[%s0 + $0x1f8] sm:$0xff]
    %v107 = vld [vmem:[%s0 + $0x200] sm:$0xff]
    %v108 = vld [vmem:[%s0 + $0x208] sm:$0xff]
    %v109 = vld [vmem:[%s0 + $0x210] sm:$0xff]
    %v110 = vld [vmem:[%s0 + $0x218] sm:$0xff]
    %v111 = vld [vmem:[%s0 + $0x220] sm:$0xff]
    %v112 = vld [vmem:[%s0 + $0x228] sm:$0xff]
    %v113 = vld [vmem:[%s0 + $0x230] sm:$0xff]
    %v114 = vld [vmem:[%s0 + $0x238] sm:$0xff]
    %v115 = vld [vmem:[%s0 + $0x240] sm:$0xff]
    %v116 = vld [vmem:[%s0 + $0x248] sm:$0xff]
    %v117 = vld [vmem:[%s0 + $0x250] sm:$0xff]
    %v118 = vld [vmem:[%s0 + $0x258] sm:$0xff]
    %v119 = vld [vmem:[%s0 + $0x260] sm:$0xff]
    %v120 = vld [vmem:[%s0 + $0x268] sm:$0xff]
    %v121 = vld [vmem:[%s0 + $0x270] sm:$0xff]
    %v122 = vld [vmem:[%s0 + $0x278] sm:$0xff]
    %v123 = vld [vmem:[%s0 + $0x280] sm:$0xff]
    %v124 = vld [vmem:[%s0 + $0x288] sm:$0xff]
    %v125 = vld [vmem:[%s0 + $0x290] sm:$0xff]
    %v126 = vld [vmem:[%s0 + $0x298] sm:$0xff]
    %v127 = vld [vmem:[%s0 + $0x2a0] sm:$0xff]
    %v128 = vld [vmem:[%s0 + $0x2a8] sm:$0xff]
    %v129 = vld [vmem:[%s0 + $0x2b0] sm:$0xff]
    %v130 = vld [vmem:[%s0 + $0x2b8] sm:$0xff]
    %v131 = vld [vmem:[%s0 + $0x2c0] sm:$0xff]
    %v132 = vld [vmem:[%s0 + $0x2c8] sm:$0xff]
    %v133 = vld [vmem:[%s0 + $0x2d0] sm:$0xff]
    %v134 = vld [vmem:[%s0 + $0x2d8] sm:$0xff]
    %v135 = vld [vmem:[%s0 + $0x2e0] sm:$0xff]
    %v136 = vld [vmem:[%s0 + $0x2e8] sm:$0xff]
    %v137 = vld [vmem:[%s0 + $0x2f0] sm:$0xff]
    %v138 = vld [vmem:[%s0 + $0x2f8] sm:$0xff]
    %v139 = vld [vmem:[%s0 + $0x300] sm:$0xff]
    %v140 = vld [vmem:[%s0 + $0x308] sm:$0xff]
    %v141 = vld [vmem:[%s0 + $0x310] sm:$0xff]
    %v142 = vld [vmem:[%s0 + $0x318] sm:$0xff]
    %v143 = vld [vmem:[%s0 + $0x320] sm:$0xff]
    %v144 = vld [vmem:[%s0 + $0x328] sm:$0xff]
    %v145 = vld [vmem:[%s0 + $0x330] sm:$0xff]
    %v146 = vld [vmem:[%s0 + $0x338] sm:$0xff]
    %v147 = vld [vmem:[%s0 + $0x340] sm:$0xff]
    %v148 = vld [vmem:[%s0 + $0x348] sm:$0xff]
    %v149 = vld [vmem:[%s0 + $0x350] sm:$0xff]
    %v150 = vld [vmem:[%s0 + $0x358] sm:$0xff]
    %v151 = vld [vmem:[%s0 + $0x360] sm:$0xff]
    %v152 = vld [vmem:[%s0 + $0x368] sm:$0xff]
    %v153 = vld [vmem:[%s0 + $0x370] sm:$0xff]
    %v154 = vld [vmem:[%s0 + $0x378] sm:$0xff]
    %v155 = vld [vmem:[%s0 + $0x380] sm:$0xff]
    %v156 = vld [vmem:[%s0 + $0x388] sm:$0xff]
    %v157 = vld [vmem:[%s0 + $0x390] sm:$0xff]
    %v158 = vld [vmem:[%s0 + $0x398] sm:$0xff]
    %v159 = vld [vmem:[%s0 + $0x3a0] sm:$0xff]
    %v160 = vld [vmem:[%s0 + $0x3a8] sm:$0xff]
    %v161 = vld [vmem:[%s0 + $0x3b0] sm:$0xff]
    %v162 = vld [vmem:[%s0 + $0x3b8] sm:$0xff]
    %v163 = vld [vmem:[%s0 + $0x3c0] sm:$0xff]
    %v164 = vld [vmem:[%s0 + $0x3c8] sm:$0xff]
    %v165 = vld [vmem:[%s0 + $0x3d0] sm:$0xff]
    %v166 = vld [vmem:[%s0 + $0x3d8] sm:$0xff]
    %v167 = vld [vmem:[%s0 + $0x3e0] sm:$0xff]
    %v168 = vld [vmem:[%s0 + $0x3e8] sm:$0xff]
    %v169 = vld [vmem:[%s0 + $0x3f0] sm:$0xff]
    %v170 = vld [vmem:[%s0 + $0x3f8] sm:$0xff]
    %v171 = vld [vmem:[%s0 + $0x400] sm:$0xff]
    %v172 = vld [vmem:[%s0 + $0x408] sm:$0xff]
    %v173 = vld [vmem:[%s0 + $0x410] sm:$0xff]
    %v174 = vld [vmem:[%s0 + $0x418] sm:$0xff]
    %v175 = vld [vmem:[%s0 + $0x420] sm:$0xff]
    %v176 = vld [vmem:[%s0 + $0x428] sm:$0xff]
    %v177 = vld [vmem:[%s0 + $0x430] sm:$0xff]
    %v178 = vld [vmem:[%s0 + $0x438] sm:$0xff]
    %v179 = vld [vmem:[%s0 + $0x440] sm:$0xff]
    %v180 = vld [vmem:[%s0 + $0x448] sm:$0xff]
    %v181 = vld [vmem:[%s0 + $0x450] sm:$0xff]
    %v182 = vld [vmem:[%s0 + $0x458] sm:$0xff]
    %v183 = vld [vmem:[%s0 + $0x460] sm:$0xff]
    %v184 = vld [vmem:[%s0 + $0x468] sm:$0xff]
    %v185 = vld [vmem:[%s0 + $0x470] sm:$0xff]
    %v186 = vld [vmem:[%s0 + $0x478] sm:$0xff]
    %v187 = vld [vmem:[%s0 + $0x480] sm:$0xff]
    %v188 = vld [vmem:[%s6] sm:$0xff]
    %v189 = vld [vmem:[%s6 + $0x8] sm:$0xff]
    %191 = vset.pattern.permute.xlu0 0
    %192 = vperm.xlu0 %191, %v188
    %v193 = vpop.permute.xlu0 %192
    %196 = vset.pattern.permute.xlu0 0
    %197 = vperm.xlu0 %196, %v189
    %v198 = vpop.permute.xlu0 %197
    %vm200 = vcmask 850944
    %v202 = vsel %vm200, %v40, 0
    %v205 = vsel %vm200, %v42, 0
    %207 = vmatprep.subr.mxu0 %v119
    %208 = vmatpush1.msra.mxu0 %v118
    %209 = vmatprep.subr.mxu0 %v114
    %210 = vmatpush1.msra.mxu0 %v113
    %211 = vmatprep.subr.mxu0 %v109
    %212 = vmatpush1.msra.mxu0 %v108
    %213 = vmatprep.subr.mxu0 %v104
    %214 = vmatpush1.msra.mxu0 %v103
    %215 = vmatprep.subr.mxu0 %v99
    %216 = vmatpush1.msra.mxu0 %v98
    %217 = vmatprep.subr.mxu0 %v94
    %218 = vmatpush1.msra.mxu0 %v93
    %219 = vmatprep.subr.mxu0 %v89
    %220 = vmatpush1.msra.mxu0 %v88
    %221 = vmatprep.subr.mxu0 %v84
    %222 = vmatpush1.msra.mxu0 %v83
    %223 = vmatprep.subr.mxu0 %v79
    %224 = vmatpush1.msra.mxu0 %v78
    %225 = vmatprep.subr.mxu0 %v74
    %226 = vmatpush1.msra.mxu0 %v73
    %227 = vmatprep.subr.mxu0 %v69
    %228 = vmatpush1.msra.mxu0 %v68
    %229 = vmatprep.subr.mxu0 %v64
    %230 = vmatpush1.msra.mxu0 %v63
    %231 = vmatprep.subr.mxu0 %v59
    %232 = vmatpush1.msra.mxu0 %v58
    %233 = vmatprep.subr.mxu0 %v54
    %234 = vmatpush1.msra.mxu0 %v53
    %235 = vmatprep.subr.mxu0 %v49
    %236 = vmatpush1.msra.mxu0 %v48
    %237 = vmatprep.subr.mxu0 %v44
    %238 = vmatpush1.msra.mxu0 %v43
    %239 = vmatprep.subr.mxu0 0.0
    %240 = vmatpush2.msra.mxu0 0.0
    %241 = vmatprep.subr.mxu0 0.0
    %242 = vmatpush2.msra.mxu0 0.0
    %243 = vmatprep.subr.mxu0 0.0
    %244 = vmatpush2.msra.mxu0 0.0
    %245 = vmatprep.subr.mxu0 %v184
    %246 = vmatpush2.msra.mxu0 %v183
    %247 = vmatprep.subr.mxu0 %v179
    %248 = vmatpush2.msra.mxu0 %v178
    %249 = vmatprep.subr.mxu0 %v174
    %250 = vmatpush2.msra.mxu0 %v173
    %251 = vmatprep.subr.mxu0 %v169
    %252 = vmatpush2.msra.mxu0 %v168
    %253 = vmatprep.subr.mxu0 %v164
    %254 = vmatpush2.msra.mxu0 %v163
    %255 = vmatprep.subr.mxu0 %v159
    %256 = vmatpush2.msra.mxu0 %v158
    %257 = vmatprep.subr.mxu0 %v154
    %258 = vmatpush2.msra.mxu0 %v153
    %259 = vmatprep.subr.mxu0 %v149
    %260 = vmatpush2.msra.mxu0 %v148
    %261 = vmatprep.subr.mxu0 %v144
    %262 = vmatpush2.msra.mxu0 %v143
    %263 = vmatprep.subr.mxu0 %v139
    %264 = vmatpush2.msra.mxu0 %v138
    %265 = vmatprep.subr.mxu0 %v134
    %266 = vmatpush2.msra.mxu0 %v133
    %267 = vmatprep.subr.mxu0 %v129
    %268 = vmatpush2.msra.mxu0 %v128
    %269 = vmatprep.subr.mxu0 %v124
    %270 = vmatpush2.msra.mxu0 %v123
    %271 = vmatprep.mubr.f32.mxu0 %v202
    %272 = vmatmul.mubr.f32.gmra.mxu0 %v39
    %v273 = vpop.f32.mrf.mxu0
    %v274 = vadd.f32 %v193, %v273
    %v275 = vpop.f32.mrf.mxu0
    %v276 = vadd.f32 %v193, %v275
    %277 = vmatprep.mubr.f32.mxu0 %v205
    %278 = vmatmul.mubr.f32.gmra.mxu0 %v41
    %v279 = vpop.f32.mrf.mxu0
    %v280 = vadd.f32 %v198, %v279
    %v281 = vpop.f32.mrf.mxu0
    %v282 = vadd.f32 %v198, %v281
    %283 = vdwg.mxu0
    %284 = vmatprep.subr.mxu0 %v121
    %285 = vmatpush1.msra.mxu0 %v120
    %286 = vmatprep.subr.mxu0 %v116
    %287 = vmatpush1.msra.mxu0 %v115
    %288 = vmatprep.subr.mxu0 %v111
    %289 = vmatpush1.msra.mxu0 %v110
    %290 = vmatprep.subr.mxu0 %v106
    %291 = vmatpush1.msra.mxu0 %v105
    %292 = vmatprep.subr.mxu0 %v101
    %293 = vmatpush1.msra.mxu0 %v100
    %294 = vmatprep.subr.mxu0 %v96
    %295 = vmatpush1.msra.mxu0 %v95
    %296 = vmatprep.subr.mxu0 %v91
    %297 = vmatpush1.msra.mxu0 %v90
    %298 = vmatprep.subr.mxu0 %v86
    %299 = vmatpush1.msra.mxu0 %v85
    %300 = vmatprep.subr.mxu0 %v81
    %301 = vmatpush1.msra.mxu0 %v80
    %302 = vmatprep.subr.mxu0 %v76
    %303 = vmatpush1.msra.mxu0 %v75
    %304 = vmatprep.subr.mxu0 %v71
    %305 = vmatpush1.msra.mxu0 %v70
    %306 = vmatprep.subr.mxu0 %v66
    %307 = vmatpush1.msra.mxu0 %v65
    %308 = vmatprep.subr.mxu0 %v61
    %309 = vmatpush1.msra.mxu0 %v60
    %310 = vmatprep.subr.mxu0 %v56
    %311 = vmatpush1.msra.mxu0 %v55
    %312 = vmatprep.subr.mxu0 %v51
    %313 = vmatpush1.msra.mxu0 %v50
    %314 = vmatprep.subr.mxu0 %v46
    %315 = vmatpush1.msra.mxu0 %v45
    %316 = vmatprep.subr.mxu0 0.0
    %317 = vmatpush2.msra.mxu0 0.0
    %318 = vmatprep.subr.mxu0 0.0
    %319 = vmatpush2.msra.mxu0 0.0
    %320 = vmatprep.subr.mxu0 0.0
    %321 = vmatpush2.msra.mxu0 0.0
    %322 = vmatprep.subr.mxu0 %v186
    %323 = vmatpush2.msra.mxu0 %v185
    %324 = vmatprep.subr.mxu0 %v181
    %325 = vmatpush2.msra.mxu0 %v180
    %326 = vmatprep.subr.mxu0 %v176
    %327 = vmatpush2.msra.mxu0 %v175
    %328 = vmatprep.subr.mxu0 %v171
    %329 = vmatpush2.msra.mxu0 %v170
    %330 = vmatprep.subr.mxu0 %v166
    %331 = vmatpush2.msra.mxu0 %v165
    %332 = vmatprep.subr.mxu0 %v161
    %333 = vmatpush2.msra.mxu0 %v160
    %334 = vmatprep.subr.mxu0 %v156
    %335 = vmatpush2.msra.mxu0 %v155
    %336 = vmatprep.subr.mxu0 %v151
    %337 = vmatpush2.msra.mxu0 %v150
    %338 = vmatprep.subr.mxu0 %v146
    %339 = vmatpush2.msra.mxu0 %v145
    %340 = vmatprep.subr.mxu0 %v141
    %341 = vmatpush2.msra.mxu0 %v140
    %342 = vmatprep.subr.mxu0 %v136
    %343 = vmatpush2.msra.mxu0 %v135
    %344 = vmatprep.subr.mxu0 %v131
    %345 = vmatpush2.msra.mxu0 %v130
    %346 = vmatprep.subr.mxu0 %v126
    %347 = vmatpush2.msra.mxu0 %v125
    %348 = vmatprep.mubr.f32.mxu0 %v202
    %349 = vmatmul.mubr.f32.gmra.mxu0 %v39
    %v350 = vpop.f32.mrf.mxu0
    %v351 = vadd.f32 %v193, %v350
    %v352 = vpop.f32.mrf.mxu0
    %v353 = vadd.f32 %v193, %v352
    %354 = vmatprep.mubr.f32.mxu0 %v205
    %355 = vmatmul.mubr.f32.gmra.mxu0 %v41
    %v356 = vpop.f32.mrf.mxu0
    %v357 = vadd.f32 %v198, %v356
    %v358 = vpop.f32.mrf.mxu0
    %v359 = vadd.f32 %v198, %v358
    %360 = vdwg.mxu0
    %361 = vmatprep.subr.mxu0 0.0
    %362 = vmatpush1.msra.mxu0 %v122
    %363 = vmatprep.subr.mxu0 0.0
    %364 = vmatpush1.msra.mxu0 %v117
    %365 = vmatprep.subr.mxu0 0.0
    %366 = vmatpush1.msra.mxu0 %v112
    %367 = vmatprep.subr.mxu0 0.0
    %368 = vmatpush1.msra.mxu0 %v107
    %369 = vmatprep.subr.mxu0 0.0
    %370 = vmatpush1.msra.mxu0 %v102
    %371 = vmatprep.subr.mxu0 0.0
    %372 = vmatpush1.msra.mxu0 %v97
    %373 = vmatprep.subr.mxu0 0.0
    %374 = vmatpush1.msra.mxu0 %v92
    %375 = vmatprep.subr.mxu0 0.0
    %376 = vmatpush1.msra.mxu0 %v87
    %377 = vmatprep.subr.mxu0 0.0
    %378 = vmatpush1.msra.mxu0 %v82
    %379 = vmatprep.subr.mxu0 0.0
    %380 = vmatpush1.msra.mxu0 %v77
    %381 = vmatprep.subr.mxu0 0.0
    %382 = vmatpush1.msra.mxu0 %v72
    %383 = vmatprep.subr.mxu0 0.0
    %384 = vmatpush1.msra.mxu0 %v67
    %385 = vmatprep.subr.mxu0 0.0
    %386 = vmatpush1.msra.mxu0 %v62
    %387 = vmatprep.subr.mxu0 0.0
    %388 = vmatpush1.msra.mxu0 %v57
    %389 = vmatprep.subr.mxu0 0.0
    %390 = vmatpush1.msra.mxu0 %v52
    %391 = vmatprep.subr.mxu0 0.0
    %392 = vmatpush1.msra.mxu0 %v47
    %393 = vmatprep.subr.mxu0 0.0
    %394 = vmatpush2.msra.mxu0 0.0
    %395 = vmatprep.subr.mxu0 0.0
    %396 = vmatpush2.msra.mxu0 0.0
    %397 = vmatprep.subr.mxu0 0.0
    %398 = vmatpush2.msra.mxu0 0.0
    %399 = vmatprep.subr.mxu0 0.0
    %400 = vmatpush2.msra.mxu0 %v187
    %401 = vmatprep.subr.mxu0 0.0
    %402 = vmatpush2.msra.mxu0 %v182
    %403 = vmatprep.subr.mxu0 0.0
    %404 = vmatpush2.msra.mxu0 %v177
    %405 = vmatprep.subr.mxu0 0.0
    %406 = vmatpush2.msra.mxu0 %v172
    %407 = vmatprep.subr.mxu0 0.0
    %408 = vmatpush2.msra.mxu0 %v167
    %409 = vmatprep.subr.mxu0 0.0
    %410 = vmatpush2.msra.mxu0 %v162
    %411 = vmatprep.subr.mxu0 0.0
    %412 = vmatpush2.msra.mxu0 %v157
    %413 = vmatprep.subr.mxu0 0.0
    %414 = vmatpush2.msra.mxu0 %v152
    %415 = vmatprep.subr.mxu0 0.0
    %416 = vmatpush2.msra.mxu0 %v147
    %417 = vmatprep.subr.mxu0 0.0
    %418 = vmatpush2.msra.mxu0 %v142
    %419 = vmatprep.subr.mxu0 0.0
    %420 = vmatpush2.msra.mxu0 %v137
    %421 = vmatprep.subr.mxu0 0.0
    %422 = vmatpush2.msra.mxu0 %v132
    %423 = vmatprep.subr.mxu0 0.0
    %424 = vmatpush2.msra.mxu0 %v127
    %425 = vmatprep.mubr.f32.mxu0 %v202
    %426 = vmatmul.mubr.f32.gmra.mxu0 %v39
    %v427 = vpop.f32.mrf.mxu0
    %v428 = vadd.f32 %v193, %v427
    %v429 = vpop.f32.mrf.mxu0
    %430 = vmatprep.mubr.f32.mxu0 %v205
    %431 = vmatmul.mubr.f32.gmra.mxu0 %v41
    %v432 = vpop.f32.mrf.mxu0
    %v433 = vadd.f32 %v198, %v432
    %v434 = vpop.f32.mrf.mxu0
    %435 = vdwg.mxu0
    %vm436 = vcmp.gt.f32.partialorder %v274, 0.0
    %vm437 = vcmp.gt.f32.partialorder %v276, 0.0
    %vm438 = vcmp.gt.f32.partialorder %v351, 0.0
    %vm439 = vcmp.gt.f32.partialorder %v353, 0.0
    %vm440 = vcmp.gt.f32.partialorder %v428, 0.0
    %vm441 = vcmp.gt.f32.partialorder %v280, 0.0
    %vm442 = vcmp.gt.f32.partialorder %v282, 0.0
    %vm443 = vcmp.gt.f32.partialorder %v357, 0.0
    %vm444 = vcmp.gt.f32.partialorder %v359, 0.0
    %vm445 = vcmp.gt.f32.partialorder %v433, 0.0
    %v446 = vmul.f32 %v274, 0.2
    %v447 = vmul.f32 %v276, 0.2
    %v448 = vmul.f32 %v351, 0.2
    %v449 = vmul.f32 %v353, 0.2
    %v450 = vmul.f32 %v428, 0.2
    %v451 = vmul.f32 %v280, 0.2
    %v452 = vmul.f32 %v282, 0.2
    %v453 = vmul.f32 %v357, 0.2
    %v454 = vmul.f32 %v359, 0.2
    %v455 = vmul.f32 %v433, 0.2
    %v456 = vsel %vm436, %v274, %v446
    %v457 = vsel %vm437, %v276, %v447
    %v458 = vsel %vm438, %v351, %v448
    %v459 = vsel %vm439, %v353, %v449
    %v460 = vsel %vm440, %v428, %v450
    %v461 = vsel %vm441, %v280, %v451
    %v462 = vsel %vm442, %v282, %v452
    %v463 = vsel %vm443, %v357, %v453
    %v464 = vsel %vm444, %v359, %v454
    %v465 = vsel %vm445, %v433, %v455
    %470 = vrot.lane.b32.xlu0 %v456, 12
    %v471 = vpop.permute.xlu0 %470
    %472 = vrot.lane.b32.xlu0 %v457, 12
    %v473 = vpop.permute.xlu0 %472
    %474 = vrot.lane.b32.xlu0 %v461, 12
    %v475 = vpop.permute.xlu0 %474
    %476 = vrot.lane.b32.xlu0 %v462, 12
    %v477 = vpop.permute.xlu0 %476
    %vm478 = vcmask 97280
    %v479 = vsel %vm478, %v471, %v473
    %v480 = vsel %vm478, %v475, %v477
    %v483 = vmax.f32 %v456, %v479
    %v484 = vmax.f32 %v461, %v480
    %487 = vrot.lane.b32.xlu0 %v457, 24
    %v488 = vpop.permute.xlu0 %487
    %489 = vrot.lane.b32.xlu0 %v458, 24
    %v490 = vpop.permute.xlu0 %489
    %491 = vrot.lane.b32.xlu0 %v462, 24
    %v492 = vpop.permute.xlu0 %491
    %493 = vrot.lane.b32.xlu0 %v463, 24
    %v494 = vpop.permute.xlu0 %493
    %vm495 = vcmask 195584
    %v496 = vsel %vm495, %v488, %v490
    %v497 = vsel %vm495, %v492, %v494
    %v500 = vmax.f32 %v483, %v496
    %v501 = vmax.f32 %v484, %v497
    %504 = vrot.lane.b32.xlu0 %v458, 36
    %v505 = vpop.permute.xlu0 %504
    %506 = vrot.lane.b32.xlu0 %v459, 36
    %v507 = vpop.permute.xlu0 %506
    %508 = vrot.lane.b32.xlu0 %v463, 36
    %v509 = vpop.permute.xlu0 %508
    %510 = vrot.lane.b32.xlu0 %v464, 36
    %v511 = vpop.permute.xlu0 %510
    %vm512 = vcmask 293888
    %v513 = vsel %vm512, %v505, %v507
    %v514 = vsel %vm512, %v509, %v511
    %v517 = vmax.f32 %v500, %v513
    %v518 = vmax.f32 %v501, %v514
    %521 = vrot.lane.b32.xlu0 %v459, 48
    %v522 = vpop.permute.xlu0 %521
    %523 = vrot.lane.b32.xlu0 %v460, 48
    %v524 = vpop.permute.xlu0 %523
    %525 = vrot.lane.b32.xlu0 %v464, 48
    %v526 = vpop.permute.xlu0 %525
    %527 = vrot.lane.b32.xlu0 %v465, 48
    %v528 = vpop.permute.xlu0 %527
    %vm529 = vcmask 392192
    %v530 = vsel %vm529, %v522, %v524
    %v531 = vsel %vm529, %v526, %v528
    %v534 = vmax.f32 %v517, %v530
    %v535 = vmax.f32 %v518, %v531
    %538 = vrot.lane.b32.xlu0 %v534, 126
    %v539 = vpop.permute.xlu0 %538
    %540 = vrot.lane.b32.xlu0 %v535, 126
    %v541 = vpop.permute.xlu0 %540
    %544 = vrot.lane.b32.xlu0 %v534, 124
    %v545 = vpop.permute.xlu0 %544
    %546 = vrot.lane.b32.xlu0 %v535, 124
    %v547 = vpop.permute.xlu0 %546
    %550 = vrot.lane.b32.xlu0 %v534, 122
    %v551 = vpop.permute.xlu0 %550
    %552 = vrot.lane.b32.xlu0 %v535, 122
    %v553 = vpop.permute.xlu0 %552
    %556 = vrot.lane.b32.xlu0 %v534, 120
    %v557 = vpop.permute.xlu0 %556
    %558 = vrot.lane.b32.xlu0 %v535, 120
    %v559 = vpop.permute.xlu0 %558
    %v562 = vld [vmem:[%s2] sm:$0xff]
    %v563 = vld [vmem:[%s2 + $0x8] sm:$0xff]
    %v564 = vld [vmem:[%s2 + $0x10] sm:$0xff]
    %v565 = vld [vmem:[%s2 + $0x18] sm:$0xff]
    %v566 = vld [vmem:[%s6 + $0x10] sm:$0xff]
    %v567 = vld [vmem:[%s6 + $0x18] sm:$0xff]
    %v568 = vld [vmem:[%s6 + $0x20] sm:$0xff]
    %v569 = vld [vmem:[%s6 + $0x28] sm:$0xff]
    %571 = vset.pattern.permute.xlu0 0
    %572 = vperm.xlu0 %571, %v566
    %v573 = vpop.permute.xlu0 %572
    %576 = vset.pattern.permute.xlu0 0
    %577 = vperm.xlu0 %576, %v567
    %v578 = vpop.permute.xlu0 %577
    %581 = vset.pattern.permute.xlu0 0
    %582 = vperm.xlu0 %581, %v568
    %v583 = vpop.permute.xlu0 %582
    %586 = vset.pattern.permute.xlu0 0
    %587 = vperm.xlu0 %586, %v569
    %v588 = vpop.permute.xlu0 %587
    %vm590 = vcmask 654336
    %v592 = vsel %vm590, %v562, 0
    %v595 = vsel %vm590, %v563, 0
    %v598 = vsel %vm590, %v564, 0
    %v601 = vsel %vm590, %v565, 0
    %603 = vmatprep.subr.mxu0 0.0
    %604 = vmatpush1.msra.mxu0 0.0
    %605 = vmatprep.subr.mxu0 0.0
    %606 = vmatpush1.msra.mxu0 0.0
    %607 = vmatprep.subr.mxu0 0.0
    %608 = vmatpush1.msra.mxu0 0.0
    %609 = vmatprep.subr.mxu0 0.0
    %610 = vmatpush1.msra.mxu0 0.0
    %611 = vmatprep.subr.mxu0 0.0
    %612 = vmatpush1.msra.mxu0 0.0
    %613 = vmatprep.subr.mxu0 0.0
    %614 = vmatpush1.msra.mxu0 0.0
    %615 = vmatprep.subr.mxu0 0.0
    %616 = vmatpush1.msra.mxu0 %v559
    %617 = vmatprep.subr.mxu0 0.0
    %618 = vmatpush1.msra.mxu0 %v557
    %619 = vmatprep.subr.mxu0 0.0
    %620 = vmatpush1.msra.mxu0 %v553
    %621 = vmatprep.subr.mxu0 0.0
    %622 = vmatpush1.msra.mxu0 %v551
    %623 = vmatprep.subr.mxu0 0.0
    %624 = vmatpush1.msra.mxu0 %v547
    %625 = vmatprep.subr.mxu0 0.0
    %626 = vmatpush1.msra.mxu0 %v545
    %627 = vmatprep.subr.mxu0 0.0
    %628 = vmatpush1.msra.mxu0 %v541
    %629 = vmatprep.subr.mxu0 0.0
    %630 = vmatpush1.msra.mxu0 %v539
    %631 = vmatprep.subr.mxu0 0.0
    %632 = vmatpush1.msra.mxu0 %v535
    %633 = vmatprep.subr.mxu0 0.0
    %634 = vmatpush1.msra.mxu0 %v534
    %635 = vmatprep.subr.mxu0 0.0
    %636 = vmatpush2.msra.mxu0 0.0
    %637 = vmatprep.subr.mxu0 0.0
    %638 = vmatpush2.msra.mxu0 0.0
    %639 = vmatprep.subr.mxu0 0.0
    %640 = vmatpush2.msra.mxu0 0.0
    %641 = vmatprep.subr.mxu0 0.0
    %642 = vmatpush2.msra.mxu0 0.0
    %643 = vmatprep.subr.mxu0 0.0
    %644 = vmatpush2.msra.mxu0 0.0
    %645 = vmatprep.subr.mxu0 0.0
    %646 = vmatpush2.msra.mxu0 0.0
    %647 = vmatprep.subr.mxu0 0.0
    %648 = vmatpush2.msra.mxu0 0.0
    %649 = vmatprep.subr.mxu0 0.0
    %650 = vmatpush2.msra.mxu0 0.0
    %651 = vmatprep.subr.mxu0 0.0
    %652 = vmatpush2.msra.mxu0 0.0
    %653 = vmatprep.subr.mxu0 0.0
    %654 = vmatpush2.msra.mxu0 0.0
    %655 = vmatprep.subr.mxu0 0.0
    %656 = vmatpush2.msra.mxu0 0.0
    %657 = vmatprep.subr.mxu0 0.0
    %658 = vmatpush2.msra.mxu0 0.0
    %659 = vmatprep.subr.mxu0 0.0
    %660 = vmatpush2.msra.mxu0 0.0
    %661 = vmatprep.subr.mxu0 0.0
    %662 = vmatpush2.msra.mxu0 0.0
    %663 = vmatprep.subr.mxu0 0.0
    %664 = vmatpush2.msra.mxu0 0.0
    %665 = vmatprep.subr.mxu0 0.0
    %666 = vmatpush2.msra.mxu0 0.0
    %667 = vmatprep.mubr.f32.mxu0 0.0
    %668 = vmatmul.mubr.f32.gmra.mxu0 %v592
    %v669 = vpop.f32.mrf.mxu0
    %v670 = vadd.f32 %v573, %v669
    %v671 = vpop.f32.mrf.mxu0
    %672 = vmatprep.mubr.f32.mxu0 0.0
    %673 = vmatmul.mubr.f32.gmra.mxu0 %v595
    %v674 = vpop.f32.mrf.mxu0
    %v675 = vadd.f32 %v578, %v674
    %v676 = vpop.f32.mrf.mxu0
    %677 = vmatprep.mubr.f32.mxu0 0.0
    %678 = vmatmul.mubr.f32.gmra.mxu0 %v598
    %v679 = vpop.f32.mrf.mxu0
    %v680 = vadd.f32 %v583, %v679
    %v681 = vpop.f32.mrf.mxu0
    %682 = vmatprep.mubr.f32.mxu0 0.0
    %683 = vmatmul.mubr.f32.gmra.mxu0 %v601
    %v684 = vpop.f32.mrf.mxu0
    %v685 = vadd.f32 %v588, %v684
    %v686 = vpop.f32.mrf.mxu0
    %687 = vdwg.mxu0
    %vm688 = vcmp.gt.f32.partialorder %v670, 0.0
    %vm689 = vcmp.gt.f32.partialorder %v675, 0.0
    %vm690 = vcmp.gt.f32.partialorder %v680, 0.0
    %vm691 = vcmp.gt.f32.partialorder %v685, 0.0
    %v692 = vmul.f32 %v670, 0.2
    %v693 = vmul.f32 %v675, 0.2
    %v694 = vmul.f32 %v680, 0.2
    %v695 = vmul.f32 %v685, 0.2
    %v696 = vsel %vm688, %v670, %v692
    %v697 = vsel %vm689, %v675, %v693
    %v698 = vsel %vm690, %v680, %v694
    %v699 = vsel %vm691, %v685, %v695
    %704 = vrot.lane.b32.xlu0 %v696, 126
    %v705 = vpop.permute.xlu0 %704
    %706 = vrot.lane.b32.xlu0 %v697, 126
    %v707 = vpop.permute.xlu0 %706
    %708 = vrot.lane.b32.xlu0 %v698, 126
    %v709 = vpop.permute.xlu0 %708
    %710 = vrot.lane.b32.xlu0 %v699, 126
    %v711 = vpop.permute.xlu0 %710
    %v716 = vmax.f32 %v696, %v705
    %v717 = vmax.f32 %v697, %v707
    %v718 = vmax.f32 %v698, %v709
    %v719 = vmax.f32 %v699, %v711
    %720 = vrot.lane.b32.xlu0 %v696, 124
    %v721 = vpop.permute.xlu0 %720
    %722 = vrot.lane.b32.xlu0 %v697, 124
    %v723 = vpop.permute.xlu0 %722
    %724 = vrot.lane.b32.xlu0 %v698, 124
    %v725 = vpop.permute.xlu0 %724
    %726 = vrot.lane.b32.xlu0 %v699, 124
    %v727 = vpop.permute.xlu0 %726
    %v732 = vmax.f32 %v716, %v721
    %v733 = vmax.f32 %v717, %v723
    %v734 = vmax.f32 %v718, %v725
    %v735 = vmax.f32 %v719, %v727
    %v736 = vld [vmem:[%s5] sm:$0xff]
    %v737 = vld [vmem:[%s5 + $0x8] sm:$0xff]
    %v738 = vld [vmem:[%s5 + $0x10] sm:$0xff]
    %v739 = vld [vmem:[%s5 + $0x18] sm:$0xff]
    %v740 = vld [vmem:[%s5 + $0x20] sm:$0xff]
    %v741 = vld [vmem:[%s5 + $0x28] sm:$0xff]
    %v742 = vld [vmem:[%s5 + $0x30] sm:$0xff]
    %v743 = vld [vmem:[%s5 + $0x38] sm:$0xff]
    %v744 = vld [vmem:[%s5 + $0x40] sm:$0xff]
    %v745 = vld [vmem:[%s5 + $0x48] sm:$0xff]
    %v746 = vld [vmem:[%s5 + $0x50] sm:$0xff]
    %v747 = vld [vmem:[%s5 + $0x58] sm:$0xff]
    %v748 = vld [vmem:[%s5 + $0x60] sm:$0xff]
    %v750 = vsel %vm200, %v732, 0
    %v753 = vsel %vm200, %v733, 0
    %v756 = vsel %vm200, %v734, 0
    %v759 = vsel %vm200, %v735, 0
    %761 = vmatprep.subr.mxu0 0.0
    %762 = vmatpush1.msra.mxu0 0.0
    %763 = vmatprep.subr.mxu0 0.0
    %764 = vmatpush1.msra.mxu0 0.0
    %765 = vmatprep.subr.mxu0 0.0
    %766 = vmatpush1.msra.mxu0 0.0
    %767 = vmatprep.subr.mxu0 0.0
    %768 = vmatpush1.msra.mxu0 %v748
    %769 = vmatprep.subr.mxu0 0.0
    %770 = vmatpush1.msra.mxu0 %v747
    %771 = vmatprep.subr.mxu0 0.0
    %772 = vmatpush1.msra.mxu0 %v746
    %773 = vmatprep.subr.mxu0 0.0
    %774 = vmatpush1.msra.mxu0 %v745
    %775 = vmatprep.subr.mxu0 0.0
    %776 = vmatpush1.msra.mxu0 %v744
    %777 = vmatprep.subr.mxu0 0.0
    %778 = vmatpush1.msra.mxu0 %v743
    %779 = vmatprep.subr.mxu0 0.0
    %780 = vmatpush1.msra.mxu0 %v742
    %781 = vmatprep.subr.mxu0 0.0
    %782 = vmatpush1.msra.mxu0 %v741
    %783 = vmatprep.subr.mxu0 0.0
    %784 = vmatpush1.msra.mxu0 %v740
    %785 = vmatprep.subr.mxu0 0.0
    %786 = vmatpush1.msra.mxu0 %v739
    %787 = vmatprep.subr.mxu0 0.0
    %788 = vmatpush1.msra.mxu0 %v738
    %789 = vmatprep.subr.mxu0 0.0
    %790 = vmatpush1.msra.mxu0 %v737
    %791 = vmatprep.subr.mxu0 0.0
    %792 = vmatpush1.msra.mxu0 %v736
    %793 = vmatprep.subr.mxu0 0.0
    %794 = vmatpush2.msra.mxu0 0.0
    %795 = vmatprep.subr.mxu0 0.0
    %796 = vmatpush2.msra.mxu0 0.0
    %797 = vmatprep.subr.mxu0 0.0
    %798 = vmatpush2.msra.mxu0 0.0
    %799 = vmatprep.subr.mxu0 0.0
    %800 = vmatpush2.msra.mxu0 0.0
    %801 = vmatprep.subr.mxu0 0.0
    %802 = vmatpush2.msra.mxu0 0.0
    %803 = vmatprep.subr.mxu0 0.0
    %804 = vmatpush2.msra.mxu0 0.0
    %805 = vmatprep.subr.mxu0 0.0
    %806 = vmatpush2.msra.mxu0 0.0
    %807 = vmatprep.subr.mxu0 0.0
    %808 = vmatpush2.msra.mxu0 0.0
    %809 = vmatprep.subr.mxu0 0.0
    %810 = vmatpush2.msra.mxu0 0.0
    %811 = vmatprep.subr.mxu0 0.0
    %812 = vmatpush2.msra.mxu0 0.0
    %813 = vmatprep.subr.mxu0 0.0
    %814 = vmatpush2.msra.mxu0 0.0
    %815 = vmatprep.subr.mxu0 0.0
    %816 = vmatpush2.msra.mxu0 0.0
    %817 = vmatprep.subr.mxu0 0.0
    %818 = vmatpush2.msra.mxu0 0.0
    %819 = vmatprep.subr.mxu0 0.0
    %820 = vmatpush2.msra.mxu0 0.0
    %821 = vmatprep.subr.mxu0 0.0
    %822 = vmatpush2.msra.mxu0 0.0
    %823 = vmatprep.subr.mxu0 0.0
    %824 = vmatpush2.msra.mxu0 0.0
    %825 = vmatprep.mubr.f32.mxu0 0.0
    %826 = vmatmul.mubr.f32.gmra.mxu0 %v750
    %v827 = vpop.f32.mrf.mxu0
    %v828 = vadd.f32 0.0, %v827
    %v829 = vpop.f32.mrf.mxu0
    %830 = vmatprep.mubr.f32.mxu0 0.0
    %831 = vmatmul.mubr.f32.gmra.mxu0 %v753
    %v832 = vpop.f32.mrf.mxu0
    %v833 = vadd.f32 0.0, %v832
    %v834 = vpop.f32.mrf.mxu0
    %835 = vmatprep.mubr.f32.mxu0 0.0
    %836 = vmatmul.mubr.f32.gmra.mxu0 %v756
    %v837 = vpop.f32.mrf.mxu0
    %v838 = vadd.f32 0.0, %v837
    %v839 = vpop.f32.mrf.mxu0
    %840 = vmatprep.mubr.f32.mxu0 0.0
    %841 = vmatmul.mubr.f32.gmra.mxu0 %v759
    %v842 = vpop.f32.mrf.mxu0
    %v843 = vadd.f32 0.0, %v842
    %v844 = vpop.f32.mrf.mxu0
    %845 = vdwg.mxu0
    %850 = vrot.lane.b32.xlu0 %v828, 124
    %v851 = vpop.permute.xlu0 %850
    %852 = vrot.lane.b32.xlu0 %v833, 124
    %v853 = vpop.permute.xlu0 %852
    %854 = vrot.lane.b32.xlu0 %v838, 124
    %v855 = vpop.permute.xlu0 %854
    %856 = vrot.lane.b32.xlu0 %v843, 124
    %v857 = vpop.permute.xlu0 %856
    %862 = vrot.lane.b32.xlu0 %v828, 120
    %v863 = vpop.permute.xlu0 %862
    %864 = vrot.lane.b32.xlu0 %v833, 120
    %v865 = vpop.permute.xlu0 %864
    %866 = vrot.lane.b32.xlu0 %v838, 120
    %v867 = vpop.permute.xlu0 %866
    %868 = vrot.lane.b32.xlu0 %v843, 120
    %v869 = vpop.permute.xlu0 %868
    %v874 = vld [vmem:[%s3] sm:$0xff]
    %v875 = vld [vmem:[%s3 + $0x8] sm:$0xff]
    %v876 = vld [vmem:[%s3 + $0x10] sm:$0xff]
    %v877 = vld [vmem:[%s3 + $0x18] sm:$0xff]
    %v878 = vld [vmem:[%s6 + $0x30] sm:$0xff]
    %v879 = vld [vmem:[%s6 + $0x38] sm:$0xff]
    %v880 = vld [vmem:[%s6 + $0x40] sm:$0xff]
    %v881 = vld [vmem:[%s6 + $0x48] sm:$0xff]
    %883 = vset.pattern.permute.xlu0 0
    %884 = vperm.xlu0 %883, %v878
    %v885 = vpop.permute.xlu0 %884
    %888 = vset.pattern.permute.xlu0 0
    %889 = vperm.xlu0 %888, %v879
    %v890 = vpop.permute.xlu0 %889
    %893 = vset.pattern.permute.xlu0 0
    %894 = vperm.xlu0 %893, %v880
    %v895 = vpop.permute.xlu0 %894
    %898 = vset.pattern.permute.xlu0 0
    %899 = vperm.xlu0 %898, %v881
    %v900 = vpop.permute.xlu0 %899
    %vm902 = vcmask 785408
    %v904 = vsel %vm902, %v874, 0
    %v907 = vsel %vm902, %v875, 0
    %v910 = vsel %vm902, %v876, 0
    %v913 = vsel %vm902, %v877, 0
    %915 = vmatprep.subr.mxu0 0.0
    %916 = vmatpush1.msra.mxu0 0.0
    %917 = vmatprep.subr.mxu0 0.0
    %918 = vmatpush1.msra.mxu0 0.0
    %919 = vmatprep.subr.mxu0 0.0
    %920 = vmatpush1.msra.mxu0 0.0
    %921 = vmatprep.subr.mxu0 0.0
    %922 = vmatpush1.msra.mxu0 0.0
    %923 = vmatprep.subr.mxu0 0.0
    %924 = vmatpush1.msra.mxu0 %v869
    %925 = vmatprep.subr.mxu0 0.0
    %926 = vmatpush1.msra.mxu0 %v867
    %927 = vmatprep.subr.mxu0 0.0
    %928 = vmatpush1.msra.mxu0 %v865
    %929 = vmatprep.subr.mxu0 0.0
    %930 = vmatpush1.msra.mxu0 %v863
    %931 = vmatprep.subr.mxu0 0.0
    %932 = vmatpush1.msra.mxu0 %v857
    %933 = vmatprep.subr.mxu0 0.0
    %934 = vmatpush1.msra.mxu0 %v855
    %935 = vmatprep.subr.mxu0 0.0
    %936 = vmatpush1.msra.mxu0 %v853
    %937 = vmatprep.subr.mxu0 0.0
    %938 = vmatpush1.msra.mxu0 %v851
    %939 = vmatprep.subr.mxu0 0.0
    %940 = vmatpush1.msra.mxu0 %v843
    %941 = vmatprep.subr.mxu0 0.0
    %942 = vmatpush1.msra.mxu0 %v838
    %943 = vmatprep.subr.mxu0 0.0
    %944 = vmatpush1.msra.mxu0 %v833
    %945 = vmatprep.subr.mxu0 0.0
    %946 = vmatpush1.msra.mxu0 %v828
    %947 = vmatprep.subr.mxu0 0.0
    %948 = vmatpush2.msra.mxu0 0.0
    %949 = vmatprep.subr.mxu0 0.0
    %950 = vmatpush2.msra.mxu0 0.0
    %951 = vmatprep.subr.mxu0 0.0
    %952 = vmatpush2.msra.mxu0 0.0
    %953 = vmatprep.subr.mxu0 0.0
    %954 = vmatpush2.msra.mxu0 0.0
    %955 = vmatprep.subr.mxu0 0.0
    %956 = vmatpush2.msra.mxu0 0.0
    %957 = vmatprep.subr.mxu0 0.0
    %958 = vmatpush2.msra.mxu0 0.0
    %959 = vmatprep.subr.mxu0 0.0
    %960 = vmatpush2.msra.mxu0 0.0
    %961 = vmatprep.subr.mxu0 0.0
    %962 = vmatpush2.msra.mxu0 0.0
    %963 = vmatprep.subr.mxu0 0.0
    %964 = vmatpush2.msra.mxu0 0.0
    %965 = vmatprep.subr.mxu0 0.0
    %966 = vmatpush2.msra.mxu0 0.0
    %967 = vmatprep.subr.mxu0 0.0
    %968 = vmatpush2.msra.mxu0 0.0
    %969 = vmatprep.subr.mxu0 0.0
    %970 = vmatpush2.msra.mxu0 0.0
    %971 = vmatprep.subr.mxu0 0.0
    %972 = vmatpush2.msra.mxu0 0.0
    %973 = vmatprep.subr.mxu0 0.0
    %974 = vmatpush2.msra.mxu0 0.0
    %975 = vmatprep.subr.mxu0 0.0
    %976 = vmatpush2.msra.mxu0 0.0
    %977 = vmatprep.subr.mxu0 0.0
    %978 = vmatpush2.msra.mxu0 0.0
    %979 = vmatprep.mubr.f32.mxu0 0.0
    %980 = vmatmul.mubr.f32.gmra.mxu0 %v904
    %v981 = vpop.f32.mrf.mxu0
    %v982 = vadd.f32 %v885, %v981
    %v983 = vpop.f32.mrf.mxu0
    %984 = vmatprep.mubr.f32.mxu0 0.0
    %985 = vmatmul.mubr.f32.gmra.mxu0 %v907
    %v986 = vpop.f32.mrf.mxu0
    %v987 = vadd.f32 %v890, %v986
    %v988 = vpop.f32.mrf.mxu0
    %989 = vmatprep.mubr.f32.mxu0 0.0
    %990 = vmatmul.mubr.f32.gmra.mxu0 %v910
    %v991 = vpop.f32.mrf.mxu0
    %v992 = vadd.f32 %v895, %v991
    %v993 = vpop.f32.mrf.mxu0
    %994 = vmatprep.mubr.f32.mxu0 0.0
    %995 = vmatmul.mubr.f32.gmra.mxu0 %v913
    %v996 = vpop.f32.mrf.mxu0
    %v997 = vadd.f32 %v900, %v996
    %v998 = vpop.f32.mrf.mxu0
    %999 = vdwg.mxu0
    %vm1000 = vcmp.gt.f32.partialorder %v982, 0.0
    %vm1001 = vcmp.gt.f32.partialorder %v987, 0.0
    %vm1002 = vcmp.gt.f32.partialorder %v992, 0.0
    %vm1003 = vcmp.gt.f32.partialorder %v997, 0.0
    %v1004 = vmul.f32 %v982, 0.2
    %v1005 = vmul.f32 %v987, 0.2
    %v1006 = vmul.f32 %v992, 0.2
    %v1007 = vmul.f32 %v997, 0.2
    %v1008 = vsel %vm1000, %v982, %v1004
    %v1009 = vsel %vm1001, %v987, %v1005
    %v1010 = vsel %vm1002, %v992, %v1006
    %v1011 = vsel %vm1003, %v997, %v1007
    %1016 = vrot.lane.b32.xlu0 %v1008, 122
    %v1017 = vpop.permute.xlu0 %1016
    %1018 = vrot.lane.b32.xlu0 %v1009, 122
    %v1019 = vpop.permute.xlu0 %1018
    %1020 = vrot.lane.b32.xlu0 %v1010, 122
    %v1021 = vpop.permute.xlu0 %1020
    %1022 = vrot.lane.b32.xlu0 %v1011, 122
    %v1023 = vpop.permute.xlu0 %1022
    %1028 = vrot.lane.b32.xlu0 %v1008, 116
    %v1029 = vpop.permute.xlu0 %1028
    %1030 = vrot.lane.b32.xlu0 %v1009, 116
    %v1031 = vpop.permute.xlu0 %1030
    %1032 = vrot.lane.b32.xlu0 %v1010, 116
    %v1033 = vpop.permute.xlu0 %1032
    %1034 = vrot.lane.b32.xlu0 %v1011, 116
    %v1035 = vpop.permute.xlu0 %1034
    %v1040 = vld [vmem:[%s3 + $0x20] sm:$0xff]
    %v1041 = vld [vmem:[%s3 + $0x28] sm:$0xff]
    %v1042 = vld [vmem:[%s3 + $0x30] sm:$0xff]
    %v1043 = vld [vmem:[%s3 + $0x38] sm:$0xff]
    %v1044 = vld [vmem:[%s6 + $0x50] sm:$0xff]
    %v1045 = vld [vmem:[%s6 + $0x58] sm:$0xff]
    %v1046 = vld [vmem:[%s6 + $0x60] sm:$0xff]
    %v1047 = vld [vmem:[%s6 + $0x68] sm:$0xff]
    %1049 = vset.pattern.permute.xlu0 0
    %1050 = vperm.xlu0 %1049, %v1044
    %v1051 = vpop.permute.xlu0 %1050
    %1054 = vset.pattern.permute.xlu0 0
    %1055 = vperm.xlu0 %1054, %v1045
    %v1056 = vpop.permute.xlu0 %1055
    %1059 = vset.pattern.permute.xlu0 0
    %1060 = vperm.xlu0 %1059, %v1046
    %v1061 = vpop.permute.xlu0 %1060
    %1064 = vset.pattern.permute.xlu0 0
    %1065 = vperm.xlu0 %1064, %v1047
    %v1066 = vpop.permute.xlu0 %1065
    %v1069 = vsel %vm902, %v1040, 0
    %v1072 = vsel %vm902, %v1041, 0
    %v1075 = vsel %vm902, %v1042, 0
    %v1078 = vsel %vm902, %v1043, 0
    %1080 = vmatprep.subr.mxu0 0.0
    %1081 = vmatpush1.msra.mxu0 0.0
    %1082 = vmatprep.subr.mxu0 0.0
    %1083 = vmatpush1.msra.mxu0 0.0
    %1084 = vmatprep.subr.mxu0 0.0
    %1085 = vmatpush1.msra.mxu0 0.0
    %1086 = vmatprep.subr.mxu0 0.0
    %1087 = vmatpush1.msra.mxu0 0.0
    %1088 = vmatprep.subr.mxu0 0.0
    %1089 = vmatpush1.msra.mxu0 %v1035
    %1090 = vmatprep.subr.mxu0 0.0
    %1091 = vmatpush1.msra.mxu0 %v1033
    %1092 = vmatprep.subr.mxu0 0.0
    %1093 = vmatpush1.msra.mxu0 %v1031
    %1094 = vmatprep.subr.mxu0 0.0
    %1095 = vmatpush1.msra.mxu0 %v1029
    %1096 = vmatprep.subr.mxu0 0.0
    %1097 = vmatpush1.msra.mxu0 %v1023
    %1098 = vmatprep.subr.mxu0 0.0
    %1099 = vmatpush1.msra.mxu0 %v1021
    %1100 = vmatprep.subr.mxu0 0.0
    %1101 = vmatpush1.msra.mxu0 %v1019
    %1102 = vmatprep.subr.mxu0 0.0
    %1103 = vmatpush1.msra.mxu0 %v1017
    %1104 = vmatprep.subr.mxu0 0.0
    %1105 = vmatpush1.msra.mxu0 %v1011
    %1106 = vmatprep.subr.mxu0 0.0
    %1107 = vmatpush1.msra.mxu0 %v1010
    %1108 = vmatprep.subr.mxu0 0.0
    %1109 = vmatpush1.msra.mxu0 %v1009
    %1110 = vmatprep.subr.mxu0 0.0
    %1111 = vmatpush1.msra.mxu0 %v1008
    %1112 = vmatprep.subr.mxu0 0.0
    %1113 = vmatpush2.msra.mxu0 0.0
    %1114 = vmatprep.subr.mxu0 0.0
    %1115 = vmatpush2.msra.mxu0 0.0
    %1116 = vmatprep.subr.mxu0 0.0
    %1117 = vmatpush2.msra.mxu0 0.0
    %1118 = vmatprep.subr.mxu0 0.0
    %1119 = vmatpush2.msra.mxu0 0.0
    %1120 = vmatprep.subr.mxu0 0.0
    %1121 = vmatpush2.msra.mxu0 0.0
    %1122 = vmatprep.subr.mxu0 0.0
    %1123 = vmatpush2.msra.mxu0 0.0
    %1124 = vmatprep.subr.mxu0 0.0
    %1125 = vmatpush2.msra.mxu0 0.0
    %1126 = vmatprep.subr.mxu0 0.0
    %1127 = vmatpush2.msra.mxu0 0.0
    %1128 = vmatprep.subr.mxu0 0.0
    %1129 = vmatpush2.msra.mxu0 0.0
    %1130 = vmatprep.subr.mxu0 0.0
    %1131 = vmatpush2.msra.mxu0 0.0
    %1132 = vmatprep.subr.mxu0 0.0
    %1133 = vmatpush2.msra.mxu0 0.0
    %1134 = vmatprep.subr.mxu0 0.0
    %1135 = vmatpush2.msra.mxu0 0.0
    %1136 = vmatprep.subr.mxu0 0.0
    %1137 = vmatpush2.msra.mxu0 0.0
    %1138 = vmatprep.subr.mxu0 0.0
    %1139 = vmatpush2.msra.mxu0 0.0
    %1140 = vmatprep.subr.mxu0 0.0
    %1141 = vmatpush2.msra.mxu0 0.0
    %1142 = vmatprep.subr.mxu0 0.0
    %1143 = vmatpush2.msra.mxu0 0.0
    %1144 = vmatprep.mubr.f32.mxu0 0.0
    %1145 = vmatmul.mubr.f32.gmra.mxu0 %v1069
    %v1146 = vpop.f32.mrf.mxu0
    %v1147 = vadd.f32 %v1051, %v1146
    %v1148 = vpop.f32.mrf.mxu0
    %1149 = vmatprep.mubr.f32.mxu0 0.0
    %1150 = vmatmul.mubr.f32.gmra.mxu0 %v1072
    %v1151 = vpop.f32.mrf.mxu0
    %v1152 = vadd.f32 %v1056, %v1151
    %v1153 = vpop.f32.mrf.mxu0
    %1154 = vmatprep.mubr.f32.mxu0 0.0
    %1155 = vmatmul.mubr.f32.gmra.mxu0 %v1075
    %v1156 = vpop.f32.mrf.mxu0
    %v1157 = vadd.f32 %v1061, %v1156
    %v1158 = vpop.f32.mrf.mxu0
    %1159 = vmatprep.mubr.f32.mxu0 0.0
    %1160 = vmatmul.mubr.f32.gmra.mxu0 %v1078
    %v1161 = vpop.f32.mrf.mxu0
    %v1162 = vadd.f32 %v1066, %v1161
    %v1163 = vpop.f32.mrf.mxu0
    %1164 = vdwg.mxu0
    %vm1165 = vcmp.gt.f32.partialorder %v1147, 0.0
    %vm1166 = vcmp.gt.f32.partialorder %v1152, 0.0
    %vm1167 = vcmp.gt.f32.partialorder %v1157, 0.0
    %vm1168 = vcmp.gt.f32.partialorder %v1162, 0.0
    %v1169 = vmul.f32 %v1147, 0.2
    %v1170 = vmul.f32 %v1152, 0.2
    %v1171 = vmul.f32 %v1157, 0.2
    %v1172 = vmul.f32 %v1162, 0.2
    %v1173 = vsel %vm1165, %v1147, %v1169
    %v1174 = vsel %vm1166, %v1152, %v1170
    %v1175 = vsel %vm1167, %v1157, %v1171
    %v1176 = vsel %vm1168, %v1162, %v1172
    %1177 = vxpose.xlu0.b32.start [1/16] %v1173, 128
    %1178 = vxpose.xlu0.b32.cont [2/16] %v1174, 128
    %1179 = vxpose.xlu0.b32.cont [3/16] %v1175, 128
    %1180 = vxpose.xlu0.b32.cont [4/16] %v1176, 128
    %1181 = vxpose.xlu0.b32.cont [5/16] 0.0, 128
    %1182 = vxpose.xlu0.b32.cont [6/16] 0.0, 128
    %1183 = vxpose.xlu0.b32.cont [7/16] 0.0, 128
    %1184 = vxpose.xlu0.b32.cont [8/16] 0.0, 128
    %1185 = vxpose.xlu0.b32.cont [9/16] 0.0, 128
    %1186 = vxpose.xlu0.b32.cont [10/16] 0.0, 128
    %1187 = vxpose.xlu0.b32.cont [11/16] 0.0, 128
    %1188 = vxpose.xlu0.b32.cont [12/16] 0.0, 128
    %1189 = vxpose.xlu0.b32.cont [13/16] 0.0, 128
    %1190 = vxpose.xlu0.b32.cont [14/16] 0.0, 128
    %1191 = vxpose.xlu0.b32.cont [15/16] 0.0, 128
    %1192 = vxpose.xlu0.b32.end [16/16] 0.0, 128
    %v1193 = vpop.trf.xlu0
    %v1194 = vpop.trf.xlu0
    %v1195 = vpop.trf.xlu0
    %v1196 = vpop.trf.xlu0
    %v1197 = vpop.trf.xlu0
    %v1198 = vpop.trf.xlu0
    %v1199 = vpop.trf.xlu0
    %v1200 = vpop.trf.xlu0
    %v1201 = vpop.trf.xlu0
    %v1202 = vpop.trf.xlu0
    %v1203 = vpop.trf.xlu0
    %v1204 = vpop.trf.xlu0
    %v1205 = vpop.trf.xlu0
    %v1206 = vpop.trf.xlu0
    %v1207 = vpop.trf.xlu0
    %v1208 = vpop.trf.xlu0
    %v1209 = vld [vmem:[%s4] sm:$0xff]
    %v1210 = vld [vmem:[%s4 + $0x8] sm:$0xff]
    %v1211 = vld [vmem:[%s4 + $0x10] sm:$0xff]
    %v1212 = vld [vmem:[%s4 + $0x18] sm:$0xff]
    %v1213 = vld [vmem:[%s7] sm:$0x1]
    %v1215 = vlaneseq
    %v1216 = vshrl.u32 %v1215, 7
    %v1217 = vsub.s32 0, %v1216
    %v1218 = vrot.slane %v1213, %v1217
    %vm1220 = vcmask 261120
    %v1222 = vsel %vm1220, %v1193, 0
    %v1225 = vsel %vm1220, %v1194, 0
    %1227 = vmatprep.subr.mxu0 0.0
    %1228 = vmatpush1.msra.mxu0 0.0
    %1229 = vmatprep.subr.mxu0 0.0
    %1230 = vmatpush1.msra.mxu0 0.0
    %1231 = vmatprep.subr.mxu0 0.0
    %1232 = vmatpush1.msra.mxu0 0.0
    %1233 = vmatprep.subr.mxu0 0.0
    %1234 = vmatpush1.msra.mxu0 0.0
    %1235 = vmatprep.subr.mxu0 0.0
    %1236 = vmatpush1.msra.mxu0 0.0
    %1237 = vmatprep.subr.mxu0 0.0
    %1238 = vmatpush1.msra.mxu0 0.0
    %1239 = vmatprep.subr.mxu0 0.0
    %1240 = vmatpush1.msra.mxu0 0.0
    %1241 = vmatprep.subr.mxu0 0.0
    %1242 = vmatpush1.msra.mxu0 0.0
    %1243 = vmatprep.subr.mxu0 0.0
    %1244 = vmatpush1.msra.mxu0 0.0
    %1245 = vmatprep.subr.mxu0 0.0
    %1246 = vmatpush1.msra.mxu0 0.0
    %1247 = vmatprep.subr.mxu0 0.0
    %1248 = vmatpush1.msra.mxu0 0.0
    %1249 = vmatprep.subr.mxu0 0.0
    %1250 = vmatpush1.msra.mxu0 0.0
    %1251 = vmatprep.subr.mxu0 0.0
    %1252 = vmatpush1.msra.mxu0 %v1212
    %1253 = vmatprep.subr.mxu0 0.0
    %1254 = vmatpush1.msra.mxu0 %v1211
    %1255 = vmatprep.subr.mxu0 0.0
    %1256 = vmatpush1.msra.mxu0 %v1210
    %1257 = vmatprep.subr.mxu0 0.0
    %1258 = vmatpush1.msra.mxu0 %v1209
    %1259 = vmatprep.subr.mxu0 0.0
    %1260 = vmatpush2.msra.mxu0 0.0
    %1261 = vmatprep.subr.mxu0 0.0
    %1262 = vmatpush2.msra.mxu0 0.0
    %1263 = vmatprep.subr.mxu0 0.0
    %1264 = vmatpush2.msra.mxu0 0.0
    %1265 = vmatprep.subr.mxu0 0.0
    %1266 = vmatpush2.msra.mxu0 0.0
    %1267 = vmatprep.subr.mxu0 0.0
    %1268 = vmatpush2.msra.mxu0 0.0
    %1269 = vmatprep.subr.mxu0 0.0
    %1270 = vmatpush2.msra.mxu0 0.0
    %1271 = vmatprep.subr.mxu0 0.0
    %1272 = vmatpush2.msra.mxu0 0.0
    %1273 = vmatprep.subr.mxu0 0.0
    %1274 = vmatpush2.msra.mxu0 0.0
    %1275 = vmatprep.subr.mxu0 0.0
    %1276 = vmatpush2.msra.mxu0 0.0
    %1277 = vmatprep.subr.mxu0 0.0
    %1278 = vmatpush2.msra.mxu0 0.0
    %1279 = vmatprep.subr.mxu0 0.0
    %1280 = vmatpush2.msra.mxu0 0.0
    %1281 = vmatprep.subr.mxu0 0.0
    %1282 = vmatpush2.msra.mxu0 0.0
    %1283 = vmatprep.subr.mxu0 0.0
    %1284 = vmatpush2.msra.mxu0 0.0
    %1285 = vmatprep.subr.mxu0 0.0
    %1286 = vmatpush2.msra.mxu0 0.0
    %1287 = vmatprep.subr.mxu0 0.0
    %1288 = vmatpush2.msra.mxu0 0.0
    %1289 = vmatprep.subr.mxu0 0.0
    %1290 = vmatpush2.msra.mxu0 0.0
    %1291 = vmatprep.mubr.f32.mxu0 0.0
    %1292 = vmatmul.mubr.f32.gmra.mxu0 %v1222
    %v1293 = vpop.f32.mrf.mxu0
    %v1294 = vadd.f32 %v1218, %v1293
    %v1295 = vpop.f32.mrf.mxu0
    %1296 = vmatprep.mubr.f32.mxu0 0.0
    %1297 = vmatmul.mubr.f32.gmra.mxu0 %v1225
    %v1298 = vpop.f32.mrf.mxu0
    %v1299 = vadd.f32 %v1218, %v1298
    %v1300 = vpop.f32.mrf.mxu0
    %1301 = vdwg.mxu0
    %vm1302 = vcmp.gt.f32.partialorder %v1294, 0.0
    %vm1303 = vcmp.gt.f32.partialorder %v1299, 0.0
    %v1304 = vmul.f32 %v1294, 0.2
    %v1305 = vmul.f32 %v1299, 0.2
    %v1306 = vsel %vm1302, %v1294, %v1304
    %v1307 = vsel %vm1303, %v1299, %v1305
    %v1308 = vld [vmem:[%s8] sm:$0xff]
    %v1309 = vld [vmem:[%s8 + $0x8] sm:$0xff]
    %v1310 = vld [vmem:[%s8 + $0x10] sm:$0xff]
    %v1311 = vld [vmem:[%s8 + $0x18] sm:$0xff]
    %v1312 = vld [vmem:[%s8 + $0x20] sm:$0xff]
    %v1313 = vld [vmem:[%s8 + $0x28] sm:$0xff]
    %v1314 = vld [vmem:[%s8 + $0x30] sm:$0xff]
    %v1315 = vld [vmem:[%s8 + $0x38] sm:$0xff]
    %v1316 = vld [vmem:[%s10] sm:$0x1]
    %v1318 = vlaneseq
    %v1319 = vshrl.u32 %v1318, 7
    %v1320 = vsub.s32 0, %v1319
    %v1321 = vrot.slane %v1316, %v1320
    %vm1323 = vcmask 523264
    %v1325 = vsel %vm1323, %v1306, 0
    %v1328 = vsel %vm1323, %v1307, 0
    %1330 = vmatprep.subr.mxu0 0.0
    %1331 = vmatpush1.msra.mxu0 0.0
    %1332 = vmatprep.subr.mxu0 0.0
    %1333 = vmatpush1.msra.mxu0 0.0
    %1334 = vmatprep.subr.mxu0 0.0
    %1335 = vmatpush1.msra.mxu0 0.0
    %1336 = vmatprep.subr.mxu0 0.0
    %1337 = vmatpush1.msra.mxu0 0.0
    %1338 = vmatprep.subr.mxu0 0.0
    %1339 = vmatpush1.msra.mxu0 0.0
    %1340 = vmatprep.subr.mxu0 0.0
    %1341 = vmatpush1.msra.mxu0 0.0
    %1342 = vmatprep.subr.mxu0 0.0
    %1343 = vmatpush1.msra.mxu0 0.0
    %1344 = vmatprep.subr.mxu0 0.0
    %1345 = vmatpush1.msra.mxu0 0.0
    %1346 = vmatprep.subr.mxu0 0.0
    %1347 = vmatpush1.msra.mxu0 %v1315
    %1348 = vmatprep.subr.mxu0 0.0
    %1349 = vmatpush1.msra.mxu0 %v1314
    %1350 = vmatprep.subr.mxu0 0.0
    %1351 = vmatpush1.msra.mxu0 %v1313
    %1352 = vmatprep.subr.mxu0 0.0
    %1353 = vmatpush1.msra.mxu0 %v1312
    %1354 = vmatprep.subr.mxu0 0.0
    %1355 = vmatpush1.msra.mxu0 %v1311
    %1356 = vmatprep.subr.mxu0 0.0
    %1357 = vmatpush1.msra.mxu0 %v1310
    %1358 = vmatprep.subr.mxu0 0.0
    %1359 = vmatpush1.msra.mxu0 %v1309
    %1360 = vmatprep.subr.mxu0 0.0
    %1361 = vmatpush1.msra.mxu0 %v1308
    %1362 = vmatprep.subr.mxu0 0.0
    %1363 = vmatpush2.msra.mxu0 0.0
    %1364 = vmatprep.subr.mxu0 0.0
    %1365 = vmatpush2.msra.mxu0 0.0
    %1366 = vmatprep.subr.mxu0 0.0
    %1367 = vmatpush2.msra.mxu0 0.0
    %1368 = vmatprep.subr.mxu0 0.0
    %1369 = vmatpush2.msra.mxu0 0.0
    %1370 = vmatprep.subr.mxu0 0.0
    %1371 = vmatpush2.msra.mxu0 0.0
    %1372 = vmatprep.subr.mxu0 0.0
    %1373 = vmatpush2.msra.mxu0 0.0
    %1374 = vmatprep.subr.mxu0 0.0
    %1375 = vmatpush2.msra.mxu0 0.0
    %1376 = vmatprep.subr.mxu0 0.0
    %1377 = vmatpush2.msra.mxu0 0.0
    %1378 = vmatprep.subr.mxu0 0.0
    %1379 = vmatpush2.msra.mxu0 0.0
    %1380 = vmatprep.subr.mxu0 0.0
    %1381 = vmatpush2.msra.mxu0 0.0
    %1382 = vmatprep.subr.mxu0 0.0
    %1383 = vmatpush2.msra.mxu0 0.0
    %1384 = vmatprep.subr.mxu0 0.0
    %1385 = vmatpush2.msra.mxu0 0.0
    %1386 = vmatprep.subr.mxu0 0.0
    %1387 = vmatpush2.msra.mxu0 0.0
    %1388 = vmatprep.subr.mxu0 0.0
    %1389 = vmatpush2.msra.mxu0 0.0
    %1390 = vmatprep.subr.mxu0 0.0
    %1391 = vmatpush2.msra.mxu0 0.0
    %1392 = vmatprep.subr.mxu0 0.0
    %1393 = vmatpush2.msra.mxu0 0.0
    %1394 = vmatprep.mubr.f32.mxu0 0.0
    %1395 = vmatmul.mubr.f32.gmra.mxu0 %v1325
    %v1396 = vpop.f32.mrf.mxu0
    %v1397 = vadd.f32 %v1321, %v1396
    %v1398 = vpop.f32.mrf.mxu0
    %1399 = vmatprep.mubr.f32.mxu0 0.0
    %1400 = vmatmul.mubr.f32.gmra.mxu0 %v1328
    %v1401 = vpop.f32.mrf.mxu0
    %v1402 = vadd.f32 %v1321, %v1401
    %v1403 = vpop.f32.mrf.mxu0
    %1404 = vdwg.mxu0
    %v1405 = vld [vmem:[%s9] sm:$0xff]
    %v1406 = vld [vmem:[%s9 + $0x8] sm:$0xff]
    %v1407 = vld [vmem:[%s9 + $0x10] sm:$0xff]
    %v1408 = vld [vmem:[%s9 + $0x18] sm:$0xff]
    %v1410 = vsel %vm1220, 0.0, 0
    %1412 = vmatprep.subr.mxu0 0.0
    %1413 = vmatpush1.msra.mxu0 0.0
    %1414 = vmatprep.subr.mxu0 0.0
    %1415 = vmatpush1.msra.mxu0 0.0
    %1416 = vmatprep.subr.mxu0 0.0
    %1417 = vmatpush1.msra.mxu0 0.0
    %1418 = vmatprep.subr.mxu0 0.0
    %1419 = vmatpush1.msra.mxu0 0.0
    %1420 = vmatprep.subr.mxu0 0.0
    %1421 = vmatpush1.msra.mxu0 0.0
    %1422 = vmatprep.subr.mxu0 0.0
    %1423 = vmatpush1.msra.mxu0 0.0
    %1424 = vmatprep.subr.mxu0 0.0
    %1425 = vmatpush1.msra.mxu0 0.0
    %1426 = vmatprep.subr.mxu0 0.0
    %1427 = vmatpush1.msra.mxu0 0.0
    %1428 = vmatprep.subr.mxu0 0.0
    %1429 = vmatpush1.msra.mxu0 0.0
    %1430 = vmatprep.subr.mxu0 0.0
    %1431 = vmatpush1.msra.mxu0 0.0
    %1432 = vmatprep.subr.mxu0 0.0
    %1433 = vmatpush1.msra.mxu0 0.0
    %1434 = vmatprep.subr.mxu0 0.0
    %1435 = vmatpush1.msra.mxu0 0.0
    %1436 = vmatprep.subr.mxu0 0.0
    %1437 = vmatpush1.msra.mxu0 %v1408
    %1438 = vmatprep.subr.mxu0 0.0
    %1439 = vmatpush1.msra.mxu0 %v1407
    %1440 = vmatprep.subr.mxu0 0.0
    %1441 = vmatpush1.msra.mxu0 %v1406
    %1442 = vmatprep.subr.mxu0 0.0
    %1443 = vmatpush1.msra.mxu0 %v1405
    %1444 = vmatprep.subr.mxu0 0.0
    %1445 = vmatpush2.msra.mxu0 0.0
    %1446 = vmatprep.subr.mxu0 0.0
    %1447 = vmatpush2.msra.mxu0 0.0
    %1448 = vmatprep.subr.mxu0 0.0
    %1449 = vmatpush2.msra.mxu0 0.0
    %1450 = vmatprep.subr.mxu0 0.0
    %1451 = vmatpush2.msra.mxu0 0.0
    %1452 = vmatprep.subr.mxu0 0.0
    %1453 = vmatpush2.msra.mxu0 0.0
    %1454 = vmatprep.subr.mxu0 0.0
    %1455 = vmatpush2.msra.mxu0 0.0
    %1456 = vmatprep.subr.mxu0 0.0
    %1457 = vmatpush2.msra.mxu0 0.0
    %1458 = vmatprep.subr.mxu0 0.0
    %1459 = vmatpush2.msra.mxu0 0.0
    %1460 = vmatprep.subr.mxu0 0.0
    %1461 = vmatpush2.msra.mxu0 0.0
    %1462 = vmatprep.subr.mxu0 0.0
    %1463 = vmatpush2.msra.mxu0 0.0
    %1464 = vmatprep.subr.mxu0 0.0
    %1465 = vmatpush2.msra.mxu0 0.0
    %1466 = vmatprep.subr.mxu0 0.0
    %1467 = vmatpush2.msra.mxu0 0.0
    %1468 = vmatprep.subr.mxu0 0.0
    %1469 = vmatpush2.msra.mxu0 0.0
    %1470 = vmatprep.subr.mxu0 0.0
    %1471 = vmatpush2.msra.mxu0 0.0
    %1472 = vmatprep.subr.mxu0 0.0
    %1473 = vmatpush2.msra.mxu0 0.0
    %1474 = vmatprep.subr.mxu0 0.0
    %1475 = vmatpush2.msra.mxu0 0.0
    %1476 = vmatprep.mubr.f32.mxu0 0.0
    %1477 = vmatmul.mubr.f32.gmra.mxu0 %v1410
    %v1478 = vpop.f32.mrf.mxu0
    %v1479 = vadd.f32 0.0, %v1478
    %v1480 = vpop.f32.mrf.mxu0
    %1481 = vdwg.mxu0
    %v1482 = vadd.f32 %v1397, %v1479
    %v1483 = vxor.u32 %v1482, 2147483648
    %v1484 = vmul.f32 %v1483, 1.442695
    %v1485 = vpow.pop %v1484
    %v1486 = vadd.f32 %v1485, 1.0
    %v1487 = vrcp.pop %v1486
    %v1488 = vmul.f32 1.0, %v1487
    %v1489 = vtanh.pop %v1482
    %v1490 = vmul.f32 %v1488, 0.0
    %1492 = vrot.lane.b32.xlu0 %v1489, 64
    %v1493 = vpop.permute.xlu0 %1492
    %v1495 = vmul.f32 %v1488, %v1493
    %1497 = vrot.lane.b32.xlu0 %v1495, 32
    %v1498 = vpop.permute.xlu0 %1497
    %v1500 = vadd.f32 %v1490, %v1498
    %v1501 = vtanh.pop %v1500
    %1503 = vrot.lane.b32.xlu0 %v1501, 64
    %v1504 = vpop.permute.xlu0 %1503
    %v1506 = vmul.f32 %v1488, %v1504
    %1508 = vrot.lane.b32.xlu0 %v1506, 32
    %v1509 = vpop.permute.xlu0 %1508
    %v1510 = vsel %vm1220, %v1509, 0
    %1512 = vmatprep.subr.mxu0 0.0
    %1513 = vmatpush1.msra.mxu0 0.0
    %1514 = vmatprep.subr.mxu0 0.0
    %1515 = vmatpush1.msra.mxu0 0.0
    %1516 = vmatprep.subr.mxu0 0.0
    %1517 = vmatpush1.msra.mxu0 0.0
    %1518 = vmatprep.subr.mxu0 0.0
    %1519 = vmatpush1.msra.mxu0 0.0
    %1520 = vmatprep.subr.mxu0 0.0
    %1521 = vmatpush1.msra.mxu0 0.0
    %1522 = vmatprep.subr.mxu0 0.0
    %1523 = vmatpush1.msra.mxu0 0.0
    %1524 = vmatprep.subr.mxu0 0.0
    %1525 = vmatpush1.msra.mxu0 0.0
    %1526 = vmatprep.subr.mxu0 0.0
    %1527 = vmatpush1.msra.mxu0 0.0
    %1528 = vmatprep.subr.mxu0 0.0
    %1529 = vmatpush1.msra.mxu0 0.0
    %1530 = vmatprep.subr.mxu0 0.0
    %1531 = vmatpush1.msra.mxu0 0.0
    %1532 = vmatprep.subr.mxu0 0.0
    %1533 = vmatpush1.msra.mxu0 0.0
    %1534 = vmatprep.subr.mxu0 0.0
    %1535 = vmatpush1.msra.mxu0 0.0
    %1536 = vmatprep.subr.mxu0 0.0
    %1537 = vmatpush1.msra.mxu0 %v1408
    %1538 = vmatprep.subr.mxu0 0.0
    %1539 = vmatpush1.msra.mxu0 %v1407
    %1540 = vmatprep.subr.mxu0 0.0
    %1541 = vmatpush1.msra.mxu0 %v1406
    %1542 = vmatprep.subr.mxu0 0.0
    %1543 = vmatpush1.msra.mxu0 %v1405
    %1544 = vmatprep.subr.mxu0 0.0
    %1545 = vmatpush2.msra.mxu0 0.0
    %1546 = vmatprep.subr.mxu0 0.0
    %1547 = vmatpush2.msra.mxu0 0.0
    %1548 = vmatprep.subr.mxu0 0.0
    %1549 = vmatpush2.msra.mxu0 0.0
    %1550 = vmatprep.subr.mxu0 0.0
    %1551 = vmatpush2.msra.mxu0 0.0
    %1552 = vmatprep.subr.mxu0 0.0
    %1553 = vmatpush2.msra.mxu0 0.0
    %1554 = vmatprep.subr.mxu0 0.0
    %1555 = vmatpush2.msra.mxu0 0.0
    %1556 = vmatprep.subr.mxu0 0.0
    %1557 = vmatpush2.msra.mxu0 0.0
    %1558 = vmatprep.subr.mxu0 0.0
    %1559 = vmatpush2.msra.mxu0 0.0
    %1560 = vmatprep.subr.mxu0 0.0
    %1561 = vmatpush2.msra.mxu0 0.0
    %1562 = vmatprep.subr.mxu0 0.0
    %1563 = vmatpush2.msra.mxu0 0.0
    %1564 = vmatprep.subr.mxu0 0.0
    %1565 = vmatpush2.msra.mxu0 0.0
    %1566 = vmatprep.subr.mxu0 0.0
    %1567 = vmatpush2.msra.mxu0 0.0
    %1568 = vmatprep.subr.mxu0 0.0
    %1569 = vmatpush2.msra.mxu0 0.0
    %1570 = vmatprep.subr.mxu0 0.0
    %1571 = vmatpush2.msra.mxu0 0.0
    %1572 = vmatprep.subr.mxu0 0.0
    %1573 = vmatpush2.msra.mxu0 0.0
    %1574 = vmatprep.subr.mxu0 0.0
    %1575 = vmatpush2.msra.mxu0 0.0
    %1576 = vmatprep.mubr.f32.mxu0 0.0
    %1577 = vmatmul.mubr.f32.gmra.mxu0 %v1510
    %v1578 = vpop.f32.mrf.mxu0
    %v1579 = vadd.f32 0.0, %v1578
    %v1580 = vpop.f32.mrf.mxu0
    %1581 = vdwg.mxu0
    %v1583 = vrot.slane %v1579, 6
    %v1585 = vadd.f32 %v1397, %v1583
    %v1586 = vxor.u32 %v1585, 2147483648
    %v1587 = vmul.f32 %v1586, 1.442695
    %v1588 = vpow.pop %v1587
    %v1589 = vadd.f32 %v1588, 1.0
    %v1590 = vrcp.pop %v1589
    %v1591 = vmul.f32 1.0, %v1590
    %v1592 = vtanh.pop %v1585
    %v1594 = vrot.slane %v1500, 6
    %v1596 = vmul.f32 %v1591, %v1594
    %1598 = vrot.lane.b32.xlu0 %v1592, 64
    %v1599 = vpop.permute.xlu0 %1598
    %v1601 = vmul.f32 %v1591, %v1599
    %1603 = vrot.lane.b32.xlu0 %v1601, 32
    %v1604 = vpop.permute.xlu0 %1603
    %v1606 = vadd.f32 %v1596, %v1604
    %v1607 = vtanh.pop %v1606
    %1609 = vrot.lane.b32.xlu0 %v1607, 64
    %v1610 = vpop.permute.xlu0 %1609
    %v1612 = vmul.f32 %v1591, %v1610
    %v1614 = vrot.slane %v1612, 2
    %1615 = vrot.lane.b32.xlu0 %v1614, 32
    %v1616 = vpop.permute.xlu0 %1615
    %v1617 = vsel %vm1220, %v1616, 0
    %1619 = vmatprep.subr.mxu0 0.0
    %1620 = vmatpush1.msra.mxu0 0.0
    %1621 = vmatprep.subr.mxu0 0.0
    %1622 = vmatpush1.msra.mxu0 0.0
    %1623 = vmatprep.subr.mxu0 0.0
    %1624 = vmatpush1.msra.mxu0 0.0
    %1625 = vmatprep.subr.mxu0 0.0
    %1626 = vmatpush1.msra.mxu0 0.0
    %1627 = vmatprep.subr.mxu0 0.0
    %1628 = vmatpush1.msra.mxu0 0.0
    %1629 = vmatprep.subr.mxu0 0.0
    %1630 = vmatpush1.msra.mxu0 0.0
    %1631 = vmatprep.subr.mxu0 0.0
    %1632 = vmatpush1.msra.mxu0 0.0
    %1633 = vmatprep.subr.mxu0 0.0
    %1634 = vmatpush1.msra.mxu0 0.0
    %1635 = vmatprep.subr.mxu0 0.0
    %1636 = vmatpush1.msra.mxu0 0.0
    %1637 = vmatprep.subr.mxu0 0.0
    %1638 = vmatpush1.msra.mxu0 0.0
    %1639 = vmatprep.subr.mxu0 0.0
    %1640 = vmatpush1.msra.mxu0 0.0
    %1641 = vmatprep.subr.mxu0 0.0
    %1642 = vmatpush1.msra.mxu0 0.0
    %1643 = vmatprep.subr.mxu0 0.0
    %1644 = vmatpush1.msra.mxu0 %v1408
    %1645 = vmatprep.subr.mxu0 0.0
    %1646 = vmatpush1.msra.mxu0 %v1407
    %1647 = vmatprep.subr.mxu0 0.0
    %1648 = vmatpush1.msra.mxu0 %v1406
    %1649 = vmatprep.subr.mxu0 0.0
    %1650 = vmatpush1.msra.mxu0 %v1405
    %1651 = vmatprep.subr.mxu0 0.0
    %1652 = vmatpush2.msra.mxu0 0.0
    %1653 = vmatprep.subr.mxu0 0.0
    %1654 = vmatpush2.msra.mxu0 0.0
    %1655 = vmatprep.subr.mxu0 0.0
    %1656 = vmatpush2.msra.mxu0 0.0
    %1657 = vmatprep.subr.mxu0 0.0
    %1658 = vmatpush2.msra.mxu0 0.0
    %1659 = vmatprep.subr.mxu0 0.0
    %1660 = vmatpush2.msra.mxu0 0.0
    %1661 = vmatprep.subr.mxu0 0.0
    %1662 = vmatpush2.msra.mxu0 0.0
    %1663 = vmatprep.subr.mxu0 0.0
    %1664 = vmatpush2.msra.mxu0 0.0
    %1665 = vmatprep.subr.mxu0 0.0
    %1666 = vmatpush2.msra.mxu0 0.0
    %1667 = vmatprep.subr.mxu0 0.0
    %1668 = vmatpush2.msra.mxu0 0.0
    %1669 = vmatprep.subr.mxu0 0.0
    %1670 = vmatpush2.msra.mxu0 0.0
    %1671 = vmatprep.subr.mxu0 0.0
    %1672 = vmatpush2.msra.mxu0 0.0
    %1673 = vmatprep.subr.mxu0 0.0
    %1674 = vmatpush2.msra.mxu0 0.0
    %1675 = vmatprep.subr.mxu0 0.0
    %1676 = vmatpush2.msra.mxu0 0.0
    %1677 = vmatprep.subr.mxu0 0.0
    %1678 = vmatpush2.msra.mxu0 0.0
    %1679 = vmatprep.subr.mxu0 0.0
    %1680 = vmatpush2.msra.mxu0 0.0
    %1681 = vmatprep.subr.mxu0 0.0
    %1682 = vmatpush2.msra.mxu0 0.0
    %1683 = vmatprep.mubr.f32.mxu0 0.0
    %1684 = vmatmul.mubr.f32.gmra.mxu0 %v1617
    %v1685 = vpop.f32.mrf.mxu0
    %v1686 = vadd.f32 0.0, %v1685
    %v1687 = vpop.f32.mrf.mxu0
    %1688 = vdwg.mxu0
    %v1690 = vrot.slane %v1686, 4
    %v1692 = vadd.f32 %v1397, %v1690
    %v1693 = vxor.u32 %v1692, 2147483648
    %v1694 = vmul.f32 %v1693, 1.442695
    %v1695 = vpow.pop %v1694
    %v1696 = vadd.f32 %v1695, 1.0
    %v1697 = vrcp.pop %v1696
    %v1698 = vmul.f32 1.0, %v1697
    %v1699 = vtanh.pop %v1692
    %v1701 = vrot.slane %v1606, 6
    %v1703 = vmul.f32 %v1698, %v1701
    %1705 = vrot.lane.b32.xlu0 %v1699, 64
    %v1706 = vpop.permute.xlu0 %1705
    %v1708 = vmul.f32 %v1698, %v1706
    %1710 = vrot.lane.b32.xlu0 %v1708, 32
    %v1711 = vpop.permute.xlu0 %1710
    %v1713 = vadd.f32 %v1703, %v1711
    %v1714 = vtanh.pop %v1713
    %1716 = vrot.lane.b32.xlu0 %v1714, 64
    %v1717 = vpop.permute.xlu0 %1716
    %v1719 = vmul.f32 %v1698, %v1717
    %v1721 = vrot.slane %v1719, 4
    %1722 = vrot.lane.b32.xlu0 %v1721, 32
    %v1723 = vpop.permute.xlu0 %1722
    %v1724 = vsel %vm1220, %v1723, 0
    %1726 = vmatprep.subr.mxu0 0.0
    %1727 = vmatpush1.msra.mxu0 0.0
    %1728 = vmatprep.subr.mxu0 0.0
    %1729 = vmatpush1.msra.mxu0 0.0
    %1730 = vmatprep.subr.mxu0 0.0
    %1731 = vmatpush1.msra.mxu0 0.0
    %1732 = vmatprep.subr.mxu0 0.0
    %1733 = vmatpush1.msra.mxu0 0.0
    %1734 = vmatprep.subr.mxu0 0.0
    %1735 = vmatpush1.msra.mxu0 0.0
    %1736 = vmatprep.subr.mxu0 0.0
    %1737 = vmatpush1.msra.mxu0 0.0
    %1738 = vmatprep.subr.mxu0 0.0
    %1739 = vmatpush1.msra.mxu0 0.0
    %1740 = vmatprep.subr.mxu0 0.0
    %1741 = vmatpush1.msra.mxu0 0.0
    %1742 = vmatprep.subr.mxu0 0.0
    %1743 = vmatpush1.msra.mxu0 0.0
    %1744 = vmatprep.subr.mxu0 0.0
    %1745 = vmatpush1.msra.mxu0 0.0
    %1746 = vmatprep.subr.mxu0 0.0
    %1747 = vmatpush1.msra.mxu0 0.0
    %1748 = vmatprep.subr.mxu0 0.0
    %1749 = vmatpush1.msra.mxu0 0.0
    %1750 = vmatprep.subr.mxu0 0.0
    %1751 = vmatpush1.msra.mxu0 %v1408
    %1752 = vmatprep.subr.mxu0 0.0
    %1753 = vmatpush1.msra.mxu0 %v1407
    %1754 = vmatprep.subr.mxu0 0.0
    %1755 = vmatpush1.msra.mxu0 %v1406
    %1756 = vmatprep.subr.mxu0 0.0
    %1757 = vmatpush1.msra.mxu0 %v1405
    %1758 = vmatprep.subr.mxu0 0.0
    %1759 = vmatpush2.msra.mxu0 0.0
    %1760 = vmatprep.subr.mxu0 0.0
    %1761 = vmatpush2.msra.mxu0 0.0
    %1762 = vmatprep.subr.mxu0 0.0
    %1763 = vmatpush2.msra.mxu0 0.0
    %1764 = vmatprep.subr.mxu0 0.0
    %1765 = vmatpush2.msra.mxu0 0.0
    %1766 = vmatprep.subr.mxu0 0.0
    %1767 = vmatpush2.msra.mxu0 0.0
    %1768 = vmatprep.subr.mxu0 0.0
    %1769 = vmatpush2.msra.mxu0 0.0
    %1770 = vmatprep.subr.mxu0 0.0
    %1771 = vmatpush2.msra.mxu0 0.0
    %1772 = vmatprep.subr.mxu0 0.0
    %1773 = vmatpush2.msra.mxu0 0.0
    %1774 = vmatprep.subr.mxu0 0.0
    %1775 = vmatpush2.msra.mxu0 0.0
    %1776 = vmatprep.subr.mxu0 0.0
    %1777 = vmatpush2.msra.mxu0 0.0
    %1778 = vmatprep.subr.mxu0 0.0
    %1779 = vmatpush2.msra.mxu0 0.0
    %1780 = vmatprep.subr.mxu0 0.0
    %1781 = vmatpush2.msra.mxu0 0.0
    %1782 = vmatprep.subr.mxu0 0.0
    %1783 = vmatpush2.msra.mxu0 0.0
    %1784 = vmatprep.subr.mxu0 0.0
    %1785 = vmatpush2.msra.mxu0 0.0
    %1786 = vmatprep.subr.mxu0 0.0
    %1787 = vmatpush2.msra.mxu0 0.0
    %1788 = vmatprep.subr.mxu0 0.0
    %1789 = vmatpush2.msra.mxu0 0.0
    %1790 = vmatprep.mubr.f32.mxu0 0.0
    %1791 = vmatmul.mubr.f32.gmra.mxu0 %v1724
    %v1792 = vpop.f32.mrf.mxu0
    %v1793 = vadd.f32 0.0, %v1792
    %v1794 = vpop.f32.mrf.mxu0
    %1795 = vdwg.mxu0
    %v1797 = vrot.slane %v1793, 2
    %v1799 = vadd.f32 %v1397, %v1797
    %v1800 = vxor.u32 %v1799, 2147483648
    %v1801 = vmul.f32 %v1800, 1.442695
    %v1802 = vpow.pop %v1801
    %v1803 = vadd.f32 %v1802, 1.0
    %v1804 = vrcp.pop %v1803
    %v1805 = vmul.f32 1.0, %v1804
    %v1806 = vtanh.pop %v1799
    %v1808 = vrot.slane %v1713, 6
    %v1810 = vmul.f32 %v1805, %v1808
    %1812 = vrot.lane.b32.xlu0 %v1806, 64
    %v1813 = vpop.permute.xlu0 %1812
    %v1815 = vmul.f32 %v1805, %v1813
    %1817 = vrot.lane.b32.xlu0 %v1815, 32
    %v1818 = vpop.permute.xlu0 %1817
    %v1820 = vadd.f32 %v1810, %v1818
    %v1821 = vtanh.pop %v1820
    %1823 = vrot.lane.b32.xlu0 %v1821, 64
    %v1824 = vpop.permute.xlu0 %1823
    %v1826 = vmul.f32 %v1805, %v1824
    %v1828 = vrot.slane %v1826, 6
    %1829 = vrot.lane.b32.xlu0 %v1828, 32
    %v1830 = vpop.permute.xlu0 %1829
    %v1831 = vsel %vm1220, %v1830, 0
    %1833 = vmatprep.subr.mxu0 0.0
    %1834 = vmatpush1.msra.mxu0 0.0
    %1835 = vmatprep.subr.mxu0 0.0
    %1836 = vmatpush1.msra.mxu0 0.0
    %1837 = vmatprep.subr.mxu0 0.0
    %1838 = vmatpush1.msra.mxu0 0.0
    %1839 = vmatprep.subr.mxu0 0.0
    %1840 = vmatpush1.msra.mxu0 0.0
    %1841 = vmatprep.subr.mxu0 0.0
    %1842 = vmatpush1.msra.mxu0 0.0
    %1843 = vmatprep.subr.mxu0 0.0
    %1844 = vmatpush1.msra.mxu0 0.0
    %1845 = vmatprep.subr.mxu0 0.0
    %1846 = vmatpush1.msra.mxu0 0.0
    %1847 = vmatprep.subr.mxu0 0.0
    %1848 = vmatpush1.msra.mxu0 0.0
    %1849 = vmatprep.subr.mxu0 0.0
    %1850 = vmatpush1.msra.mxu0 0.0
    %1851 = vmatprep.subr.mxu0 0.0
    %1852 = vmatpush1.msra.mxu0 0.0
    %1853 = vmatprep.subr.mxu0 0.0
    %1854 = vmatpush1.msra.mxu0 0.0
    %1855 = vmatprep.subr.mxu0 0.0
    %1856 = vmatpush1.msra.mxu0 0.0
    %1857 = vmatprep.subr.mxu0 0.0
    %1858 = vmatpush1.msra.mxu0 %v1408
    %1859 = vmatprep.subr.mxu0 0.0
    %1860 = vmatpush1.msra.mxu0 %v1407
    %1861 = vmatprep.subr.mxu0 0.0
    %1862 = vmatpush1.msra.mxu0 %v1406
    %1863 = vmatprep.subr.mxu0 0.0
    %1864 = vmatpush1.msra.mxu0 %v1405
    %1865 = vmatprep.subr.mxu0 0.0
    %1866 = vmatpush2.msra.mxu0 0.0
    %1867 = vmatprep.subr.mxu0 0.0
    %1868 = vmatpush2.msra.mxu0 0.0
    %1869 = vmatprep.subr.mxu0 0.0
    %1870 = vmatpush2.msra.mxu0 0.0
    %1871 = vmatprep.subr.mxu0 0.0
    %1872 = vmatpush2.msra.mxu0 0.0
    %1873 = vmatprep.subr.mxu0 0.0
    %1874 = vmatpush2.msra.mxu0 0.0
    %1875 = vmatprep.subr.mxu0 0.0
    %1876 = vmatpush2.msra.mxu0 0.0
    %1877 = vmatprep.subr.mxu0 0.0
    %1878 = vmatpush2.msra.mxu0 0.0
    %1879 = vmatprep.subr.mxu0 0.0
    %1880 = vmatpush2.msra.mxu0 0.0
    %1881 = vmatprep.subr.mxu0 0.0
    %1882 = vmatpush2.msra.mxu0 0.0
    %1883 = vmatprep.subr.mxu0 0.0
    %1884 = vmatpush2.msra.mxu0 0.0
    %1885 = vmatprep.subr.mxu0 0.0
    %1886 = vmatpush2.msra.mxu0 0.0
    %1887 = vmatprep.subr.mxu0 0.0
    %1888 = vmatpush2.msra.mxu0 0.0
    %1889 = vmatprep.subr.mxu0 0.0
    %1890 = vmatpush2.msra.mxu0 0.0
    %1891 = vmatprep.subr.mxu0 0.0
    %1892 = vmatpush2.msra.mxu0 0.0
    %1893 = vmatprep.subr.mxu0 0.0
    %1894 = vmatpush2.msra.mxu0 0.0
    %1895 = vmatprep.subr.mxu0 0.0
    %1896 = vmatpush2.msra.mxu0 0.0
    %1897 = vmatprep.mubr.f32.mxu0 0.0
    %1898 = vmatmul.mubr.f32.gmra.mxu0 %v1831
    %v1899 = vpop.f32.mrf.mxu0
    %v1900 = vadd.f32 0.0, %v1899
    %v1901 = vpop.f32.mrf.mxu0
    %1902 = vdwg.mxu0
    %v1903 = vadd.f32 %v1402, %v1900
    %v1904 = vxor.u32 %v1903, 2147483648
    %v1905 = vmul.f32 %v1904, 1.442695
    %v1906 = vpow.pop %v1905
    %v1907 = vadd.f32 %v1906, 1.0
    %v1908 = vrcp.pop %v1907
    %v1909 = vmul.f32 1.0, %v1908
    %v1910 = vtanh.pop %v1903
    %v1912 = vrot.slane %v1820, 6
    %v1914 = vmul.f32 %v1909, %v1912
    %1916 = vrot.lane.b32.xlu0 %v1910, 64
    %v1917 = vpop.permute.xlu0 %1916
    %v1919 = vmul.f32 %v1909, %v1917
    %1921 = vrot.lane.b32.xlu0 %v1919, 32
    %v1922 = vpop.permute.xlu0 %1921
    %v1924 = vadd.f32 %v1914, %v1922
    %v1925 = vtanh.pop %v1924
    %1927 = vrot.lane.b32.xlu0 %v1925, 64
    %v1928 = vpop.permute.xlu0 %1927
    %v1930 = vmul.f32 %v1909, %v1928
    %1932 = vrot.lane.b32.xlu0 %v1930, 32
    %v1933 = vpop.permute.xlu0 %1932
    %v1934 = vsel %vm1220, %v1933, 0
    %1936 = vmatprep.subr.mxu0 0.0
    %1937 = vmatpush1.msra.mxu0 0.0
    %1938 = vmatprep.subr.mxu0 0.0
    %1939 = vmatpush1.msra.mxu0 0.0
    %1940 = vmatprep.subr.mxu0 0.0
    %1941 = vmatpush1.msra.mxu0 0.0
    %1942 = vmatprep.subr.mxu0 0.0
    %1943 = vmatpush1.msra.mxu0 0.0
    %1944 = vmatprep.subr.mxu0 0.0
    %1945 = vmatpush1.msra.mxu0 0.0
    %1946 = vmatprep.subr.mxu0 0.0
    %1947 = vmatpush1.msra.mxu0 0.0
    %1948 = vmatprep.subr.mxu0 0.0
    %1949 = vmatpush1.msra.mxu0 0.0
    %1950 = vmatprep.subr.mxu0 0.0
    %1951 = vmatpush1.msra.mxu0 0.0
    %1952 = vmatprep.subr.mxu0 0.0
    %1953 = vmatpush1.msra.mxu0 0.0
    %1954 = vmatprep.subr.mxu0 0.0
    %1955 = vmatpush1.msra.mxu0 0.0
    %1956 = vmatprep.subr.mxu0 0.0
    %1957 = vmatpush1.msra.mxu0 0.0
    %1958 = vmatprep.subr.mxu0 0.0
    %1959 = vmatpush1.msra.mxu0 0.0
    %1960 = vmatprep.subr.mxu0 0.0
    %1961 = vmatpush1.msra.mxu0 %v1408
    %1962 = vmatprep.subr.mxu0 0.0
    %1963 = vmatpush1.msra.mxu0 %v1407
    %1964 = vmatprep.subr.mxu0 0.0
    %1965 = vmatpush1.msra.mxu0 %v1406
    %1966 = vmatprep.subr.mxu0 0.0
    %1967 = vmatpush1.msra.mxu0 %v1405
    %1968 = vmatprep.subr.mxu0 0.0
    %1969 = vmatpush2.msra.mxu0 0.0
    %1970 = vmatprep.subr.mxu0 0.0
    %1971 = vmatpush2.msra.mxu0 0.0
    %1972 = vmatprep.subr.mxu0 0.0
    %1973 = vmatpush2.msra.mxu0 0.0
    %1974 = vmatprep.subr.mxu0 0.0
    %1975 = vmatpush2.msra.mxu0 0.0
    %1976 = vmatprep.subr.mxu0 0.0
    %1977 = vmatpush2.msra.mxu0 0.0
    %1978 = vmatprep.subr.mxu0 0.0
    %1979 = vmatpush2.msra.mxu0 0.0
    %1980 = vmatprep.subr.mxu0 0.0
    %1981 = vmatpush2.msra.mxu0 0.0
    %1982 = vmatprep.subr.mxu0 0.0
    %1983 = vmatpush2.msra.mxu0 0.0
    %1984 = vmatprep.subr.mxu0 0.0
    %1985 = vmatpush2.msra.mxu0 0.0
    %1986 = vmatprep.subr.mxu0 0.0
    %1987 = vmatpush2.msra.mxu0 0.0
    %1988 = vmatprep.subr.mxu0 0.0
    %1989 = vmatpush2.msra.mxu0 0.0
    %1990 = vmatprep.subr.mxu0 0.0
    %1991 = vmatpush2.msra.mxu0 0.0
    %1992 = vmatprep.subr.mxu0 0.0
    %1993 = vmatpush2.msra.mxu0 0.0
    %1994 = vmatprep.subr.mxu0 0.0
    %1995 = vmatpush2.msra.mxu0 0.0
    %1996 = vmatprep.subr.mxu0 0.0
    %1997 = vmatpush2.msra.mxu0 0.0
    %1998 = vmatprep.subr.mxu0 0.0
    %1999 = vmatpush2.msra.mxu0 0.0
    %2000 = vmatprep.mubr.f32.mxu0 0.0
    %2001 = vmatmul.mubr.f32.gmra.mxu0 %v1934
    %v2002 = vpop.f32.mrf.mxu0
    %v2003 = vadd.f32 0.0, %v2002
    %v2004 = vpop.f32.mrf.mxu0
    %2005 = vdwg.mxu0
    %v2007 = vrot.slane %v2003, 6
    %v2009 = vadd.f32 %v1402, %v2007
    %v2010 = vxor.u32 %v2009, 2147483648
    %v2011 = vmul.f32 %v2010, 1.442695
    %v2012 = vpow.pop %v2011
    %v2013 = vadd.f32 %v2012, 1.0
    %v2014 = vrcp.pop %v2013
    %v2015 = vmul.f32 1.0, %v2014
    %v2016 = vtanh.pop %v2009
    %v2018 = vrot.slane %v1924, 6
    %v2020 = vmul.f32 %v2015, %v2018
    %2022 = vrot.lane.b32.xlu0 %v2016, 64
    %v2023 = vpop.permute.xlu0 %2022
    %v2025 = vmul.f32 %v2015, %v2023
    %2027 = vrot.lane.b32.xlu0 %v2025, 32
    %v2028 = vpop.permute.xlu0 %2027
    %v2030 = vadd.f32 %v2020, %v2028
    %v2031 = vtanh.pop %v2030
    %2033 = vrot.lane.b32.xlu0 %v2031, 64
    %v2034 = vpop.permute.xlu0 %2033
    %v2036 = vmul.f32 %v2015, %v2034
    %v2038 = vrot.slane %v2036, 2
    %2039 = vrot.lane.b32.xlu0 %v2038, 32
    %v2040 = vpop.permute.xlu0 %2039
    %v2041 = vsel %vm1220, %v2040, 0
    %2043 = vmatprep.subr.mxu0 0.0
    %2044 = vmatpush1.msra.mxu0 0.0
    %2045 = vmatprep.subr.mxu0 0.0
    %2046 = vmatpush1.msra.mxu0 0.0
    %2047 = vmatprep.subr.mxu0 0.0
    %2048 = vmatpush1.msra.mxu0 0.0
    %2049 = vmatprep.subr.mxu0 0.0
    %2050 = vmatpush1.msra.mxu0 0.0
    %2051 = vmatprep.subr.mxu0 0.0
    %2052 = vmatpush1.msra.mxu0 0.0
    %2053 = vmatprep.subr.mxu0 0.0
    %2054 = vmatpush1.msra.mxu0 0.0
    %2055 = vmatprep.subr.mxu0 0.0
    %2056 = vmatpush1.msra.mxu0 0.0
    %2057 = vmatprep.subr.mxu0 0.0
    %2058 = vmatpush1.msra.mxu0 0.0
    %2059 = vmatprep.subr.mxu0 0.0
    %2060 = vmatpush1.msra.mxu0 0.0
    %2061 = vmatprep.subr.mxu0 0.0
    %2062 = vmatpush1.msra.mxu0 0.0
    %2063 = vmatprep.subr.mxu0 0.0
    %2064 = vmatpush1.msra.mxu0 0.0
    %2065 = vmatprep.subr.mxu0 0.0
    %2066 = vmatpush1.msra.mxu0 0.0
    %2067 = vmatprep.subr.mxu0 0.0
    %2068 = vmatpush1.msra.mxu0 %v1408
    %2069 = vmatprep.subr.mxu0 0.0
    %2070 = vmatpush1.msra.mxu0 %v1407
    %2071 = vmatprep.subr.mxu0 0.0
    %2072 = vmatpush1.msra.mxu0 %v1406
    %2073 = vmatprep.subr.mxu0 0.0
    %2074 = vmatpush1.msra.mxu0 %v1405
    %2075 = vmatprep.subr.mxu0 0.0
    %2076 = vmatpush2.msra.mxu0 0.0
    %2077 = vmatprep.subr.mxu0 0.0
    %2078 = vmatpush2.msra.mxu0 0.0
    %2079 = vmatprep.subr.mxu0 0.0
    %2080 = vmatpush2.msra.mxu0 0.0
    %2081 = vmatprep.subr.mxu0 0.0
    %2082 = vmatpush2.msra.mxu0 0.0
    %2083 = vmatprep.subr.mxu0 0.0
    %2084 = vmatpush2.msra.mxu0 0.0
    %2085 = vmatprep.subr.mxu0 0.0
    %2086 = vmatpush2.msra.mxu0 0.0
    %2087 = vmatprep.subr.mxu0 0.0
    %2088 = vmatpush2.msra.mxu0 0.0
    %2089 = vmatprep.subr.mxu0 0.0
    %2090 = vmatpush2.msra.mxu0 0.0
    %2091 = vmatprep.subr.mxu0 0.0
    %2092 = vmatpush2.msra.mxu0 0.0
    %2093 = vmatprep.subr.mxu0 0.0
    %2094 = vmatpush2.msra.mxu0 0.0
    %2095 = vmatprep.subr.mxu0 0.0
    %2096 = vmatpush2.msra.mxu0 0.0
    %2097 = vmatprep.subr.mxu0 0.0
    %2098 = vmatpush2.msra.mxu0 0.0
    %2099 = vmatprep.subr.mxu0 0.0
    %2100 = vmatpush2.msra.mxu0 0.0
    %2101 = vmatprep.subr.mxu0 0.0
    %2102 = vmatpush2.msra.mxu0 0.0
    %2103 = vmatprep.subr.mxu0 0.0
    %2104 = vmatpush2.msra.mxu0 0.0
    %2105 = vmatprep.subr.mxu0 0.0
    %2106 = vmatpush2.msra.mxu0 0.0
    %2107 = vmatprep.mubr.f32.mxu0 0.0
    %2108 = vmatmul.mubr.f32.gmra.mxu0 %v2041
    %v2109 = vpop.f32.mrf.mxu0
    %v2110 = vadd.f32 0.0, %v2109
    %v2111 = vpop.f32.mrf.mxu0
    %2112 = vdwg.mxu0
    %v2114 = vrot.slane %v2110, 4
    %v2116 = vadd.f32 %v1402, %v2114
    %v2117 = vxor.u32 %v2116, 2147483648
    %v2118 = vmul.f32 %v2117, 1.442695
    %v2119 = vpow.pop %v2118
    %v2120 = vadd.f32 %v2119, 1.0
    %v2121 = vrcp.pop %v2120
    %v2122 = vmul.f32 1.0, %v2121
    %v2123 = vtanh.pop %v2116
    %v2125 = vrot.slane %v2030, 6
    %v2127 = vmul.f32 %v2122, %v2125
    %2129 = vrot.lane.b32.xlu0 %v2123, 64
    %v2130 = vpop.permute.xlu0 %2129
    %v2132 = vmul.f32 %v2122, %v2130
    %2134 = vrot.lane.b32.xlu0 %v2132, 32
    %v2135 = vpop.permute.xlu0 %2134
    %v2137 = vadd.f32 %v2127, %v2135
    %v2138 = vtanh.pop %v2137
    %2140 = vrot.lane.b32.xlu0 %v2138, 64
    %v2141 = vpop.permute.xlu0 %2140
    %v2143 = vmul.f32 %v2122, %v2141
    %v2145 = vrot.slane %v2143, 4
    %2146 = vrot.lane.b32.xlu0 %v2145, 32
    %v2147 = vpop.permute.xlu0 %2146
    %v2148 = vsel %vm1220, %v2147, 0
    %2150 = vmatprep.subr.mxu0 0.0
    %2151 = vmatpush1.msra.mxu0 0.0
    %2152 = vmatprep.subr.mxu0 0.0
    %2153 = vmatpush1.msra.mxu0 0.0
    %2154 = vmatprep.subr.mxu0 0.0
    %2155 = vmatpush1.msra.mxu0 0.0
    %2156 = vmatprep.subr.mxu0 0.0
    %2157 = vmatpush1.msra.mxu0 0.0
    %2158 = vmatprep.subr.mxu0 0.0
    %2159 = vmatpush1.msra.mxu0 0.0
    %2160 = vmatprep.subr.mxu0 0.0
    %2161 = vmatpush1.msra.mxu0 0.0
    %2162 = vmatprep.subr.mxu0 0.0
    %2163 = vmatpush1.msra.mxu0 0.0
    %2164 = vmatprep.subr.mxu0 0.0
    %2165 = vmatpush1.msra.mxu0 0.0
    %2166 = vmatprep.subr.mxu0 0.0
    %2167 = vmatpush1.msra.mxu0 0.0
    %2168 = vmatprep.subr.mxu0 0.0
    %2169 = vmatpush1.msra.mxu0 0.0
    %2170 = vmatprep.subr.mxu0 0.0
    %2171 = vmatpush1.msra.mxu0 0.0
    %2172 = vmatprep.subr.mxu0 0.0
    %2173 = vmatpush1.msra.mxu0 0.0
    %2174 = vmatprep.subr.mxu0 0.0
    %2175 = vmatpush1.msra.mxu0 %v1408
    %2176 = vmatprep.subr.mxu0 0.0
    %2177 = vmatpush1.msra.mxu0 %v1407
    %2178 = vmatprep.subr.mxu0 0.0
    %2179 = vmatpush1.msra.mxu0 %v1406
    %2180 = vmatprep.subr.mxu0 0.0
    %2181 = vmatpush1.msra.mxu0 %v1405
    %2182 = vmatprep.subr.mxu0 0.0
    %2183 = vmatpush2.msra.mxu0 0.0
    %2184 = vmatprep.subr.mxu0 0.0
    %2185 = vmatpush2.msra.mxu0 0.0
    %2186 = vmatprep.subr.mxu0 0.0
    %2187 = vmatpush2.msra.mxu0 0.0
    %2188 = vmatprep.subr.mxu0 0.0
    %2189 = vmatpush2.msra.mxu0 0.0
    %2190 = vmatprep.subr.mxu0 0.0
    %2191 = vmatpush2.msra.mxu0 0.0
    %2192 = vmatprep.subr.mxu0 0.0
    %2193 = vmatpush2.msra.mxu0 0.0
    %2194 = vmatprep.subr.mxu0 0.0
    %2195 = vmatpush2.msra.mxu0 0.0
    %2196 = vmatprep.subr.mxu0 0.0
    %2197 = vmatpush2.msra.mxu0 0.0
    %2198 = vmatprep.subr.mxu0 0.0
    %2199 = vmatpush2.msra.mxu0 0.0
    %2200 = vmatprep.subr.mxu0 0.0
    %2201 = vmatpush2.msra.mxu0 0.0
    %2202 = vmatprep.subr.mxu0 0.0
    %2203 = vmatpush2.msra.mxu0 0.0
    %2204 = vmatprep.subr.mxu0 0.0
    %2205 = vmatpush2.msra.mxu0 0.0
    %2206 = vmatprep.subr.mxu0 0.0
    %2207 = vmatpush2.msra.mxu0 0.0
    %2208 = vmatprep.subr.mxu0 0.0
    %2209 = vmatpush2.msra.mxu0 0.0
    %2210 = vmatprep.subr.mxu0 0.0
    %2211 = vmatpush2.msra.mxu0 0.0
    %2212 = vmatprep.subr.mxu0 0.0
    %2213 = vmatpush2.msra.mxu0 0.0
    %2214 = vmatprep.mubr.f32.mxu0 0.0
    %2215 = vmatmul.mubr.f32.gmra.mxu0 %v2148
    %v2216 = vpop.f32.mrf.mxu0
    %v2217 = vadd.f32 0.0, %v2216
    %v2218 = vpop.f32.mrf.mxu0
    %2219 = vdwg.mxu0
    %v2221 = vrot.slane %v2217, 2
    %v2223 = vadd.f32 %v1402, %v2221
    %v2224 = vxor.u32 %v2223, 2147483648
    %v2225 = vmul.f32 %v2224, 1.442695
    %v2226 = vpow.pop %v2225
    %v2227 = vadd.f32 %v2226, 1.0
    %v2228 = vrcp.pop %v2227
    %v2229 = vmul.f32 1.0, %v2228
    %v2230 = vtanh.pop %v2223
    %v2232 = vrot.slane %v2137, 6
    %v2234 = vmul.f32 %v2229, %v2232
    %2236 = vrot.lane.b32.xlu0 %v2230, 64
    %v2237 = vpop.permute.xlu0 %2236
    %v2239 = vmul.f32 %v2229, %v2237
    %2241 = vrot.lane.b32.xlu0 %v2239, 32
    %v2242 = vpop.permute.xlu0 %2241
    %v2244 = vadd.f32 %v2234, %v2242
    %v2245 = vtanh.pop %v2244
    %2247 = vrot.lane.b32.xlu0 %v2245, 64
    %v2248 = vpop.permute.xlu0 %2247
    %v2250 = vmul.f32 %v2229, %v2248
    %2252 = vrot.lane.b32.xlu0 %v2250, 32
    %v2253 = vpop.permute.xlu0 %2252
    %vm2255 = vcmask 261126
    %2256 = vst.msk [vmem:[#allocation2 - $0x6] sm:$0xc0] %vm2255, %v2253
    // Predicated region
    $region46: #{lstm_extractor_forward.1} parent=1 // pred_check
      _
    $region47: #{lstm_extractor_forward.1} parent=1 // pred_check_branch
      %2258 = sbr.rel (0) target = $region49
    $region48: #{lstm_extractor_forward.1} parent=1 // pred_region
      %s2260 = ssub.s32 32, 32
      %2261 = vsyncadd [#allocation3], %s2260
      %s2263 = sshll.u32 [#allocation2], 4
      %s2264 = int_to_ptr.vmem [resolvable:$true] %s2263
      %2266 = dma.vmem_to_hbm [thread:$0]  %s2264, 32, %s11, [#allocation3]
    $region49: #{lstm_extractor_forward.1} parent=1 // pred_fallthru
      _
    // Predicated region
    $region50: #{lstm_extractor_forward.1} parent=1 // pred_check
      _
    $region51: #{lstm_extractor_forward.1} parent=1 // pred_check_branch
      %2268 = sbr.rel (0) target = $region53
    $region52: #{lstm_extractor_forward.1} parent=1 // pred_region
      %2269 = dma.done [#allocation3], 32
    $region53: #{lstm_extractor_forward.1} parent=1 // pred_fallthru
      _
    %2270 = vsyncpa [#allocation3], 1

</llo_original>
